<compile_context>
chip_gen: v7x
topology: tpu7x:2x2x1
jax: 0.10.0
libtpu: 0.0.40
codegen_flags: <defaults>
</compile_context>

<pallas_src>
import jax
import jax.numpy as jnp
from jax import lax
from jax.experimental import pallas as pl
from jax.experimental.pallas import tpu as pltpu


def _cdiv(a, b):
    return -(-a // b)


def _round_up(x, m):
    return _cdiv(x, m) * m


# ----------------------------- VMEM budgeting ------------------------------- #
_VMEM_CAP_CACHE = None


def _vmem_cap_bytes():
    """Usable per-core VMEM budget (conservative fraction of detected capacity)."""
    global _VMEM_CAP_CACHE
    if _VMEM_CAP_CACHE is None:
        total = 64 * 1024 * 1024                      # conservative (v7x) fallback
        try:
            info = pltpu.get_tpu_info()
            t = getattr(info, "vmem_capacity_bytes", None)
            if t:
                total = int(t)
        except Exception:
            pass
        _VMEM_CAP_CACHE = min(int(total * 0.8), 100 * 1024 * 1024)
    return _VMEM_CAP_CACHE


def _conv_vmem_bytes(th, wo_p, max_oi, n_groups, ws, cout_p, out_itemsize, ndots):
    """Rough per-grid-step VMEM footprint for the conv kernel below."""
    m_halo = (th + max_oi) * wo_p
    tm = th * wo_p
    b = 0
    for w_ in ws:
        k_pad = w_.shape[1]
        b += 2 * n_groups * m_halo * k_pad * 2        # activation tile, dbl-buffered, bf16
        b += 2 * int(w_.size) * 2                     # weights (resident, counted x2)
    b += 2 * cout_p * 4                               # bias
    b += 2 * tm * cout_p * out_itemsize               # output tile, dbl-buffered
    if ndots > 1:
        b += tm * cout_p * 4                          # f32 accumulator scratch
    return b


# ----------------------------- Pallas kernel -------------------------------- #
def _make_conv_kernel(num_inputs, taps, tm, wo_p, m_halo, use_scratch):
    """Tap-packed Conv(+folded BN)+ReLU kernel.

    refs: x_ref_0..x_ref_{P-1}, w_ref_0..w_ref_{P-1}, b_ref, o_ref[, acc_ref]
      x_ref_p : (1, 1, G*m_halo, K_p)   activation row tile (halo baked in)
      w_ref_p : (ntaps, K_p, Cout_p)    resident weights (constant index_map)
      b_ref   : (1, Cout_p) f32         resident bias
      o_ref   : (1, tm, Cout_p)         lane-dense output tile
      acc_ref : (tm, Cout_p) f32        explicit accumulator (when >1 dot)
    taps: static tuple of (row-phase group, row offset) per row tap.
    """

    def kernel(*refs):
        x_refs = refs[:num_inputs]
        w_refs = refs[num_inputs:2 * num_inputs]
        b_ref = refs[2 * num_inputs]
        o_ref = refs[2 * num_inputs + 1]

        def tap_dot(p, t_idx, g, oi):
            # static, 8-aligned slice of the flattened (rows*cols) tile
            xs = x_refs[p][0, 0, pl.ds(g * m_halo + oi * wo_p, tm), :]   # (tm, K_p)
            return jnp.dot(xs, w_refs[p][t_idx],
                           preferred_element_type=jnp.float32)           # MXU

        if use_scratch:
            acc_ref = refs[2 * num_inputs + 2]
            first = True
            for p in range(num_inputs):
                for t_idx, (g, oi) in enumerate(taps):
                    part = tap_dot(p, t_idx, g, oi)
                    if first:
                        acc_ref[...] = part
                        first = False
                    else:
                        acc_ref[...] += part
            acc = acc_ref[...]
        else:
            g0, oi0 = taps[0]
            acc = tap_dot(0, 0, g0, oi0)

        acc = acc + b_ref[...]                                            # bias once
        o_ref[0] = jnp.maximum(acc, 0.0).astype(o_ref.dtype)

    return kernel


# ------------------------ host-side activation layout ----------------------- #
def _build_act_groups(x, *, k, s, pad_hw, full_im2col, th, ht, wo_p, max_oi, k_pad):
    """Lay x out as (N, ht, G*m_halo, k_pad) tap-packed row tiles (halo baked in)."""
    n, h, w, c = x.shape
    (pad_t, _), (pad_l, _) = pad_hw
    ho_p = ht * th

    if full_im2col:
        kk = k * k * c
        h_src = (ho_p - 1) * s + k
        w_src = (wo_p - 1) * s + k
        xp = jnp.pad(x, ((0, 0),
                         (pad_t, max(h_src - h - pad_t, 0)),
                         (pad_l, max(w_src - w - pad_l, 0)),
                         (0, 0)))
        cols = [xp[:, di::s, dj::s, :][:, :ho_p, :wo_p, :]
                for di in range(k) for dj in range(k)]
        g = jnp.concatenate(cols, axis=-1)                     # (N, ho_p, wo_p, k*k*C)
        g = jnp.pad(g, ((0, 0), (0, 0), (0, 0), (0, k_pad - kk)))
        return g.reshape(n, ht, th * wo_p, k_pad)              # G = 1, m_halo = tm

    kc = k * c
    h_need = ho_p + max_oi
    h_src = s * (h_need - 1) + max(k, s)
    w_src = s * (wo_p - 1) + k
    xp = jnp.pad(x, ((0, 0),
                     (pad_t, max(h_src - h - pad_t, 0)),
                     (pad_l, max(w_src - w - pad_l, 0)),
                     (0, 0)))
    m_halo = (th + max_oi) * wo_p
    idx = jnp.arange(ht)[:, None] * th + jnp.arange(th + max_oi)[None, :]
    phases = []
    for a in range(s):                                          # row-phase groups
        base = xp[:, a::s, :, :][:, :h_need]                    # (N, h_need, Wsrc, C)
        cols = [base[:, :, dj::s, :][:, :, :wo_p, :] for dj in range(k)]
        gp = jnp.concatenate(cols, axis=-1)                     # column taps -> K = k*C
        gp = jnp.pad(gp, ((0, 0), (0, 0), (0, 0), (0, k_pad - kc)))
        gp = jnp.take(gp, idx, axis=1)                          # halo-tiled rows
        phases.append(gp.reshape(n, ht, m_halo, k_pad))
    return jnp.concatenate(phases, axis=2)                      # (N, ht, s*m_halo, k_pad)


# ------------------------------- conv wrapper ------------------------------- #
def conv_bn_relu(xs, ws, bias_p, *, k, s, pad_hw, cout, full_im2col=False,
                 target_rows=1024):
    """Conv2d(k, stride=s, padding=pad_hw) + folded BN + ReLU (NHWC).

    xs/ws may be lists (multiple inputs whose channels are concatenated),
    which fuses torch.cat([...], dim=1) into the conv.
    """
    if not isinstance(xs, (list, tuple)):
        xs = [xs]
    if not isinstance(ws, (list, tuple)):
        ws = [ws]
    assert len(xs) == len(ws)
    num_inputs = len(xs)

    n, h, w, _ = xs[0].shape
    (pad_t, pad_b), (pad_l, pad_r) = pad_hw
    hp, wp = h + pad_t + pad_b, w + pad_l + pad_r
    ho = (hp - k) // s + 1
    wo = (wp - k) // s + 1

    cout_p = ws[0].shape[-1]                 # padded to a multiple of 128
    wo_p = _round_up(wo, 8)
    n_groups = 1 if full_im2col else s
    ntaps = 1 if full_im2col else k
    max_oi = 0 if full_im2col else (k - 1) // s
    ndots = num_inputs * ntaps
    use_scratch = ndots > 1
    out_dtype = xs[0].dtype
    out_itemsize = jnp.dtype(out_dtype).itemsize

    # Row tiling, bounded by the per-generation VMEM budget.
    cap = _vmem_cap_bytes()
    th = max(1, min(ho, _cdiv(target_rows, wo_p)))
    while th > 1 and _conv_vmem_bytes(th, wo_p, max_oi, n_groups, ws, cout_p,
                                      out_itemsize, ndots) > int(cap * 0.7):
        th = max(1, th // 2)
    ht = _cdiv(ho, th)
    th = _cdiv(ho, ht)                       # rebalance to minimize padded rows
    ho_p = ht * th
    m_halo = (th + max_oi) * wo_p
    tm = th * wo_p

    est = _conv_vmem_bytes(th, wo_p, max_oi, n_groups, ws, cout_p,
                           out_itemsize, ndots)
    vmem_limit = int(min(cap, max(2 * est + (4 << 20), 32 << 20)))

    # Host-side tap-packed, halo-tiled activation layout (one pass per input;
    # pad/slice/stack fuse into the copy that materializes the pallas input).
    xgs = [_build_act_groups(x_, k=k, s=s, pad_hw=pad_hw, full_im2col=full_im2col,
                             th=th, ht=ht, wo_p=wo_p, max_oi=max_oi,
                             k_pad=w_.shape[1])
           for x_, w_ in zip(xs, ws)]

    taps = ((0, 0),) if full_im2col else tuple((di % s, di // s) for di in range(k))

    in_specs = []
    for xg_ in xgs:
        in_specs.append(pl.BlockSpec((1, 1) + xg_.shape[2:],
                                     lambda ni, ti: (ni, ti, 0, 0)))
    for w_ in ws:
        in_specs.append(pl.BlockSpec(w_.shape, lambda ni, ti: (0, 0, 0)))
    in_specs.append(pl.BlockSpec(bias_p.shape, lambda ni, ti: (0, 0)))

    scratch = [pltpu.VMEM((tm, cout_p), jnp.float32)] if use_scratch else []

    out = pl.pallas_call(
        _make_conv_kernel(num_inputs, taps, tm, wo_p, m_halo, use_scratch),
        out_shape=jax.ShapeDtypeStruct((n, ho_p * wo_p, cout_p), out_dtype),
        grid=(n, ht),
        in_specs=in_specs,
        out_specs=pl.BlockSpec((1, tm, cout_p), lambda ni, ti: (ni, ti, 0)),
        scratch_shapes=scratch,
        compiler_params=pltpu.CompilerParams(
            dimension_semantics=("parallel", "parallel"),
            vmem_limit_bytes=vmem_limit,
        ),
    )(*xgs, *ws, bias_p)

    out = out.reshape(n, ho_p, wo_p, cout_p)[:, :ho, :wo, :cout]
    return out


# ------------------------- parameter construction --------------------------- #
def _fold_conv_bn(key, c_in, c_out, k, eps=1e-5):
    """Deterministic Conv weight + BN params, folded; bf16 weights / f32 bias."""
    kw_, kg, kb, km, kv = jax.random.split(key, 5)
    w = jax.random.normal(kw_, (c_out, c_in, k, k), jnp.float32) / jnp.sqrt(
        float(c_in * k * k))
    gamma = jax.random.uniform(kg, (c_out,), jnp.float32, 0.8, 1.2)
    beta = 0.1 * jax.random.normal(kb, (c_out,), jnp.float32)
    mean = 0.1 * jax.random.normal(km, (c_out,), jnp.float32)
    var = jax.random.uniform(kv, (c_out,), jnp.float32, 0.5, 1.5)
    scale = gamma / jnp.sqrt(var + eps)

    w_fold = (w * scale[:, None, None, None]).astype(jnp.bfloat16)    # (Cout,Cin,KH,KW)
    bias = (beta - mean * scale).astype(jnp.float32)
    w_hwio = jnp.transpose(w_fold, (2, 3, 1, 0))                      # (KH,KW,Cin,Cout)
    return {"w_hwio": w_hwio, "bias": bias, "k": k, "cout": c_out}


def _prep_taps(w_hwio, cin_splits, full_im2col, cout_p):
    """Reorder folded HWIO weights into per-input, tap-packed (ntaps,K,Cout_p)."""
    kh, kw, _, cout = w_hwio.shape
    k = kh
    ws = []
    off = 0
    for c in cin_splits:
        wpart = w_hwio[:, :, off:off + c, :]
        off += c
        if full_im2col:
            wt = wpart.reshape(1, k * k * c, cout)      # rows: (di, dj, c)
        else:
            wt = wpart.reshape(k, k * c, cout)          # tap di, rows: (dj, c)
        kdim = wt.shape[1]
        kdim_p = _round_up(kdim, 16)                    # bf16 sublane packing
        wt = jnp.pad(wt, ((0, 0), (0, kdim_p - kdim), (0, cout_p - cout)))
        ws.append(wt.astype(jnp.bfloat16))
    return ws


def init_hgstem_params(key, c1, cm, c2):
    k1, k2, k3, k4, k5 = jax.random.split(key, 5)
    raw = {
        "stem1": _fold_conv_bn(k1, c1, cm, 3),          # Conv(c1, cm, 3, 2)
        "stem2a": _fold_conv_bn(k2, cm, cm // 2, 2),    # Conv(cm, cm//2, 2, 1, 0)
        "stem2b": _fold_conv_bn(k3, cm // 2, cm, 2),    # Conv(cm//2, cm, 2, 1, 0)
        "stem3": _fold_conv_bn(k4, cm * 2, cm, 3),      # Conv(2cm, cm, 3, 2)
        "stem4": _fold_conv_bn(k5, cm, c2, 1),          # Conv(cm, c2, 1, 1)
    }

    def prep(name, im2col, cin_splits):
        r = dict(raw[name])
        cout = r["cout"]
        cout_p = _round_up(max(cout, 128), 128)         # lane-dense Cout
        r["w_taps"] = _prep_taps(r["w_hwio"], cin_splits, im2col, cout_p)
        r["bias_p"] = jnp.pad(r["bias"], (0, cout_p - cout)).reshape(1, cout_p)
        r["im2col"] = im2col
        return r

    return {
        "stem1": prep("stem1", True, [c1]),             # full im2col (tiny Cin)
        "stem2a": prep("stem2a", False, [cm]),          # column-packed taps
        "stem2b": prep("stem2b", False, [cm // 2]),
        "stem3": prep("stem3", False, [cm, cm]),        # fused concat: 2 inputs
        "stem4": prep("stem4", True, [cm]),             # 1x1 == im2col
    }


# ------------------------------ forward pass -------------------------------- #
def _conv(xin, p, *, s, pad_hw):
    return conv_bn_relu(xin, p["w_taps"], p["bias_p"], k=p["k"], s=s,
                        pad_hw=pad_hw, cout=p["cout"], full_im2col=p["im2col"])


def _maxpool_2x2_s1(x):
    # nn.MaxPool2d(kernel=2, stride=1, padding=0, ceil_mode=True): with stride 1
    # ceil_mode adds no extra windows -> output is (H-1, W-1).
    a = jnp.maximum(x[:, :-1, :-1, :], x[:, 1:, :-1, :])
    b = jnp.maximum(x[:, :-1, 1:, :], x[:, 1:, 1:, :])
    return jnp.maximum(a, b)


def hgstem_forward(x_nchw, p):
    x = jnp.transpose(x_nchw, (0, 2, 3, 1)).astype(jnp.bfloat16)     # NCHW -> NHWC
    x = _conv(x, p["stem1"], s=2, pad_hw=((1, 1), (1, 1)))           # stem1 (3x3 s2)
    x = jnp.pad(x, ((0, 0), (0, 1), (0, 1), (0, 0)))                 # F.pad [0,1,0,1]
    x2 = _conv(x, p["stem2a"], s=1, pad_hw=((0, 0), (0, 0)))         # stem2a (2x2 s1)
    # second F.pad [0,1,0,1] folded into stem2b's padding:
    x2 = _conv(x2, p["stem2b"], s=1, pad_hw=((0, 1), (0, 1)))        # stem2b (2x2 s1)
    x1 = _maxpool_2x2_s1(x)                                          # pool (XLA)
    # torch.cat([x1, x2], dim=1) fused into stem3 (two inputs, split weights):
    x = _conv([x1, x2], p["stem3"], s=2, pad_hw=((1, 1), (1, 1)))    # stem3 (3x3 s2)
    x = _conv(x, p["stem4"], s=1, pad_hw=((0, 0), (0, 0)))           # stem4 (1x1)
    return jnp.transpose(x, (0, 3, 1, 2)).astype(jnp.float32)        # NHWC -> NCHW


# --------------------------- pure-JAX reference ------------------------------ #
def _conv_ref(x, p, stride, pad_hw):
    y = lax.conv_general_dilated(
        x.astype(jnp.float32), p["w_hwio"].astype(jnp.float32),
        window_strides=(stride, stride), padding=list(pad_hw),
        dimension_numbers=("NHWC", "HWIO", "NHWC"))
    y = jnp.maximum(y + p["bias"], 0.0)
    return y.astype(jnp.bfloat16)       # mirror the kernel's bf16 activations


def hgstem_reference(x_nchw, p):
    x = jnp.transpose(x_nchw, (0, 2, 3, 1)).astype(jnp.bfloat16)
    x = _conv_ref(x, p["stem1"], 2, ((1, 1), (1, 1)))
    x = jnp.pad(x, ((0, 0), (0, 1), (0, 1), (0, 0)))
    x2 = _conv_ref(x, p["stem2a"], 1, ((0, 0), (0, 0)))
    x2 = _conv_ref(x2, p["stem2b"], 1, ((0, 1), (0, 1)))
    x1 = lax.reduce_window(x.astype(jnp.float32), -jnp.inf, lax.max,
                           (1, 2, 2, 1), (1, 1, 1, 1), "VALID").astype(jnp.bfloat16)
    x = jnp.concatenate([x1, x2], axis=-1)
    x = _conv_ref(x, p["stem3"], 2, ((1, 1), (1, 1)))
    x = _conv_ref(x, p["stem4"], 1, ((0, 0), (0, 0)))
    return jnp.transpose(x, (0, 3, 1, 2)).astype(jnp.float32)


if __name__ == "__main__":
    key = jax.random.PRNGKey(0)
    kx, kp = jax.random.split(key)

    c1, cm, c2 = 4, 8, 16
    x = jax.random.normal(kx, (2, c1, 16, 16), jnp.float32)   # NCHW, like PyTorch
    params = init_hgstem_params(kp, c1, cm, c2)

    fwd = jax.jit(lambda t: hgstem_forward(t, params))
    out = jax.block_until_ready(fwd(x))
    assert out.shape == (2, c2, 4, 4), out.shape

    ref_fn = jax.jit(lambda t: hgstem_reference(t, params))
    ref = jax.block_until_ready(ref_fn(x))
    if not jnp.allclose(out, ref, rtol=3e-2, atol=3e-2):
        max_err = float(jnp.max(jnp.abs(out - ref)))
        raise AssertionError(f"mismatch vs reference, max abs err = {max_err}")

    print("KERNEL_OK")
</pallas_src>

<mosaic_0001>
module attributes {stable_mosaic.version = 11 : i64} {
  func.func @kernel(%arg0: i32, %arg1: i32, %arg2: memref<1x1x64x48xbf16, #tpu.memory_space<vmem>>, %arg3: memref<1x48x128xbf16, #tpu.memory_space<vmem>>, %arg4: memref<1x128xf32, #tpu.memory_space<vmem>>, %arg5: memref<1x64x128xbf16, #tpu.memory_space<vmem>>) attributes {dimension_semantics = [#tpu.dimension_semantics<parallel>, #tpu.dimension_semantics<parallel>], iteration_bounds = array<i64: 2, 1>, scalar_prefetch = 0 : i64, scratch_operands = 0 : i64, tpu.core_type = #tpu.core_type<tc>, window_params = [{transform_indices = @transform_0, window_bounds = array<i64: 1, 1, 64, 48>}, {pipeline_mode = #tpu.pipeline_mode<synchronous>, transform_indices = @transform_1, window_bounds = array<i64: 1, 48, 128>}, {pipeline_mode = #tpu.pipeline_mode<synchronous>, transform_indices = @transform_2, window_bounds = array<i64: 1, 128>}, {transform_indices = @transform_3, window_bounds = array<i64: 1, 64, 128>}]} {
    %c0 = arith.constant 0 : index
    %c0_0 = arith.constant 0 : index
    %c0_1 = arith.constant 0 : index
    %c0_2 = arith.constant 0 : index
    %0 = vector.load %arg2[%c0, %c0_0, %c0_1, %c0_2] : memref<1x1x64x48xbf16, #tpu.memory_space<vmem>>, vector<1x1x64x48xbf16>
    %1 = vector.shape_cast %0 : vector<1x1x64x48xbf16> to vector<64x48xbf16>
    %c0_3 = arith.constant 0 : index
    %c0_4 = arith.constant 0 : index
    %c0_5 = arith.constant 0 : index
    %2 = vector.load %arg3[%c0_3, %c0_4, %c0_5] : memref<1x48x128xbf16, #tpu.memory_space<vmem>>, vector<1x48x128xbf16>
    %3 = vector.shape_cast %2 : vector<1x48x128xbf16> to vector<48x128xbf16>
    %cst = arith.constant dense<0.000000e+00> : vector<64x128xf32>
    %4 = tpu.matmul %1, %3, %cst {dimension_numbers = #tpu.dot_dimension_numbers<[1], [0], [0], [1], [0, 0, 1, 1], [], []>} : vector<64x48xbf16>, vector<48x128xbf16>, vector<64x128xf32> -> vector<64x128xf32>
    %c0_6 = arith.constant 0 : index
    %c0_7 = arith.constant 0 : index
    %5 = vector.load %arg4[%c0_6, %c0_7] : memref<1x128xf32, #tpu.memory_space<vmem>>, vector<1x128xf32>
    %6 = vector.broadcast %5 : vector<1x128xf32> to vector<64x128xf32>
    %7 = arith.addf %4, %6 : vector<64x128xf32>
    %cst_8 = arith.constant 0.000000e+00 : f32
    %8 = vector.broadcast %cst_8 : f32 to vector<64x128xf32>
    %9 = arith.maximumf %7, %8 : vector<64x128xf32>
    %10 = arith.truncf %9 : vector<64x128xf32> to vector<64x128xbf16>
    %c0_9 = arith.constant 0 : index
    %c0_10 = arith.constant 0 : index
    %c0_11 = arith.constant 0 : index
    %11 = vector.load %arg5[%c0_9, %c0_10, %c0_11] : memref<1x64x128xbf16, #tpu.memory_space<vmem>>, vector<1x64x128xbf16>
    %12 = vector.shape_cast %11 : vector<1x64x128xbf16> to vector<64x128xbf16>
    %13 = vector.shape_cast %10 : vector<64x128xbf16> to vector<1x64x128xbf16>
    tpu.vector_store %arg5[%c0_9, %c0_10, %c0_11], %13 {strides = array<i32>} : memref<1x64x128xbf16, #tpu.memory_space<vmem>>, vector<1x64x128xbf16>,
    return
  }
  func.func @transform_0(%arg0: i32, %arg1: i32) -> (i32, i32, i32, i32) {
    %c0_i32 = arith.constant 0 : i32
    %c0_i32_0 = arith.constant 0 : i32
    %c0_i32_1 = arith.constant 0 : i32
    return %arg0, %arg1, %c0_i32, %c0_i32_0 : i32, i32, i32, i32
  }
  func.func @transform_1(%arg0: i32, %arg1: i32) -> (i32, i32, i32) {
    %c0_i32 = arith.constant 0 : i32
    %c0_i32_0 = arith.constant 0 : i32
    %c0_i32_1 = arith.constant 0 : i32
    %c0_i32_2 = arith.constant 0 : i32
    return %c0_i32, %c0_i32_0, %c0_i32_1 : i32, i32, i32
  }
  func.func @transform_2(%arg0: i32, %arg1: i32) -> (i32, i32) {
    %c0_i32 = arith.constant 0 : i32
    %c0_i32_0 = arith.constant 0 : i32
    %c0_i32_1 = arith.constant 0 : i32
    return %c0_i32, %c0_i32_0 : i32, i32
  }
  func.func @transform_3(%arg0: i32, %arg1: i32) -> (i32, i32, i32) {
    %c0_i32 = arith.constant 0 : i32
    %c0_i32_0 = arith.constant 0 : i32
    return %arg0, %arg1, %c0_i32 : i32, i32, i32
  }
}

module attributes {stable_mosaic.version = 11 : i64} {
  func.func @kernel(%arg0: i32, %arg1: i32, %arg2: memref<1x1x72x16xbf16, #tpu.memory_space<vmem>>, %arg3: memref<2x16x128xbf16, #tpu.memory_space<vmem>>, %arg4: memref<1x128xf32, #tpu.memory_space<vmem>>, %arg5: memref<1x64x128xbf16, #tpu.memory_space<vmem>>, %arg6: memref<64x128xf32, #tpu.memory_space<vmem>>) attributes {dimension_semantics = [#tpu.dimension_semantics<parallel>, #tpu.dimension_semantics<parallel>], iteration_bounds = array<i64: 2, 1>, scalar_prefetch = 0 : i64, scratch_operands = 1 : i64, tpu.core_type = #tpu.core_type<tc>, window_params = [{transform_indices = @transform_0, window_bounds = array<i64: 1, 1, 72, 16>}, {pipeline_mode = #tpu.pipeline_mode<synchronous>, transform_indices = @transform_1, window_bounds = array<i64: 2, 16, 128>}, {pipeline_mode = #tpu.pipeline_mode<synchronous>, transform_indices = @transform_2, window_bounds = array<i64: 1, 128>}, {transform_indices = @transform_3, window_bounds = array<i64: 1, 64, 128>}]} {
    %c0 = arith.constant 0 : index
    %c0_0 = arith.constant 0 : index
    %c0_1 = arith.constant 0 : index
    %c0_2 = arith.constant 0 : index
    %0 = vector.load %arg2[%c0, %c0_0, %c0_1, %c0_2] : memref<1x1x72x16xbf16, #tpu.memory_space<vmem>>, vector<1x1x64x16xbf16>
    %1 = vector.shape_cast %0 : vector<1x1x64x16xbf16> to vector<64x16xbf16>
    %c0_3 = arith.constant 0 : index
    %c0_4 = arith.constant 0 : index
    %c0_5 = arith.constant 0 : index
    %2 = vector.load %arg3[%c0_3, %c0_4, %c0_5] : memref<2x16x128xbf16, #tpu.memory_space<vmem>>, vector<1x16x128xbf16>
    %3 = vector.shape_cast %2 : vector<1x16x128xbf16> to vector<16x128xbf16>
    %cst = arith.constant dense<0.000000e+00> : vector<64x128xf32>
    %4 = tpu.matmul %1, %3, %cst {dimension_numbers = #tpu.dot_dimension_numbers<[1], [0], [0], [1], [0, 0, 1, 1], [], []>} : vector<64x16xbf16>, vector<16x128xbf16>, vector<64x128xf32> -> vector<64x128xf32>
    %c0_6 = arith.constant 0 : index
    %c0_7 = arith.constant 0 : index
    %5 = vector.load %arg6[%c0_6, %c0_7] : memref<64x128xf32, #tpu.memory_space<vmem>>, vector<64x128xf32>
    tpu.vector_store %arg6[%c0_6, %c0_7], %4 {strides = array<i32>} : memref<64x128xf32, #tpu.memory_space<vmem>>, vector<64x128xf32>,
    %c0_8 = arith.constant 0 : index
    %c0_9 = arith.constant 0 : index
    %c8 = arith.constant 8 : index
    %c0_10 = arith.constant 0 : index
    %6 = vector.load %arg2[%c0_8, %c0_9, %c8, %c0_10] : memref<1x1x72x16xbf16, #tpu.memory_space<vmem>>, vector<1x1x64x16xbf16>
    %7 = vector.shape_cast %6 : vector<1x1x64x16xbf16> to vector<64x16xbf16>
    %c1 = arith.constant 1 : index
    %c0_11 = arith.constant 0 : index
    %c0_12 = arith.constant 0 : index
    %8 = vector.load %arg3[%c1, %c0_11, %c0_12] : memref<2x16x128xbf16, #tpu.memory_space<vmem>>, vector<1x16x128xbf16>
    %9 = vector.shape_cast %8 : vector<1x16x128xbf16> to vector<16x128xbf16>
    %cst_13 = arith.constant dense<0.000000e+00> : vector<64x128xf32>
    %10 = tpu.matmul %7, %9, %cst_13 {dimension_numbers = #tpu.dot_dimension_numbers<[1], [0], [0], [1], [0, 0, 1, 1], [], []>} : vector<64x16xbf16>, vector<16x128xbf16>, vector<64x128xf32> -> vector<64x128xf32>
    %c0_14 = arith.constant 0 : index
    %c0_15 = arith.constant 0 : index
    %11 = vector.load %arg6[%c0_14, %c0_15] : memref<64x128xf32, #tpu.memory_space<vmem>>, vector<64x128xf32>
    %12 = arith.addf %11, %10 : vector<64x128xf32>
    %c0_16 = arith.constant 0 : index
    %c0_17 = arith.constant 0 : index
    %13 = vector.load %arg6[%c0_16, %c0_17] : memref<64x128xf32, #tpu.memory_space<vmem>>, vector<64x128xf32>
    tpu.vector_store %arg6[%c0_16, %c0_17], %12 {strides = array<i32>} : memref<64x128xf32, #tpu.memory_space<vmem>>, vector<64x128xf32>,
    %c0_18 = arith.constant 0 : index
    %c0_19 = arith.constant 0 : index
    %14 = vector.load %arg6[%c0_18, %c0_19] : memref<64x128xf32, #tpu.memory_space<vmem>>, vector<64x128xf32>
    %c0_20 = arith.constant 0 : index
    %c0_21 = arith.constant 0 : index
    %15 = vector.load %arg4[%c0_20, %c0_21] : memref<1x128xf32, #tpu.memory_space<vmem>>, vector<1x128xf32>
    %16 = vector.broadcast %15 : vector<1x128xf32> to vector<64x128xf32>
    %17 = arith.addf %14, %16 : vector<64x128xf32>
    %cst_22 = arith.constant 0.000000e+00 : f32
    %18 = vector.broadcast %cst_22 : f32 to vector<64x128xf32>
    %19 = arith.maximumf %17, %18 : vector<64x128xf32>
    %20 = arith.truncf %19 : vector<64x128xf32> to vector<64x128xbf16>
    %c0_23 = arith.constant 0 : index
    %c0_24 = arith.constant 0 : index
    %c0_25 = arith.constant 0 : index
    %21 = vector.load %arg5[%c0_23, %c0_24, %c0_25] : memref<1x64x128xbf16, #tpu.memory_space<vmem>>, vector<1x64x128xbf16>
    %22 = vector.shape_cast %21 : vector<1x64x128xbf16> to vector<64x128xbf16>
    %23 = vector.shape_cast %20 : vector<64x128xbf16> to vector<1x64x128xbf16>
    tpu.vector_store %arg5[%c0_23, %c0_24, %c0_25], %23 {strides = array<i32>} : memref<1x64x128xbf16, #tpu.memory_space<vmem>>, vector<1x64x128xbf16>,
    return
  }
  func.func @transform_0(%arg0: i32, %arg1: i32) -> (i32, i32, i32, i32) {
    %c0_i32 = arith.constant 0 : i32
    %c0_i32_0 = arith.constant 0 : i32
    %c0_i32_1 = arith.constant 0 : i32
    return %arg0, %arg1, %c0_i32, %c0_i32_0 : i32, i32, i32, i32
  }
  func.func @transform_1(%arg0: i32, %arg1: i32) -> (i32, i32, i32) {
    %c0_i32 = arith.constant 0 : i32
    %c0_i32_0 = arith.constant 0 : i32
    %c0_i32_1 = arith.constant 0 : i32
    %c0_i32_2 = arith.constant 0 : i32
    return %c0_i32, %c0_i32_0, %c0_i32_1 : i32, i32, i32
  }
  func.func @transform_2(%arg0: i32, %arg1: i32) -> (i32, i32) {
    %c0_i32 = arith.constant 0 : i32
    %c0_i32_0 = arith.constant 0 : i32
    %c0_i32_1 = arith.constant 0 : i32
    return %c0_i32, %c0_i32_0 : i32, i32
  }
  func.func @transform_3(%arg0: i32, %arg1: i32) -> (i32, i32, i32) {
    %c0_i32 = arith.constant 0 : i32
    %c0_i32_0 = arith.constant 0 : i32
    return %arg0, %arg1, %c0_i32 : i32, i32, i32
  }
}

module attributes {stable_mosaic.version = 11 : i64} {
  func.func @kernel(%arg0: i32, %arg1: i32, %arg2: memref<1x1x80x32xbf16, #tpu.memory_space<vmem>>, %arg3: memref<1x1x80x32xbf16, #tpu.memory_space<vmem>>, %arg4: memref<3x32x128xbf16, #tpu.memory_space<vmem>>, %arg5: memref<3x32x128xbf16, #tpu.memory_space<vmem>>, %arg6: memref<1x128xf32, #tpu.memory_space<vmem>>, %arg7: memref<1x32x128xbf16, #tpu.memory_space<vmem>>, %arg8: memref<32x128xf32, #tpu.memory_space<vmem>>) attributes {dimension_semantics = [#tpu.dimension_semantics<parallel>, #tpu.dimension_semantics<parallel>], iteration_bounds = array<i64: 2, 1>, scalar_prefetch = 0 : i64, scratch_operands = 1 : i64, tpu.core_type = #tpu.core_type<tc>, window_params = [{transform_indices = @transform_0, window_bounds = array<i64: 1, 1, 80, 32>}, {transform_indices = @transform_1, window_bounds = array<i64: 1, 1, 80, 32>}, {pipeline_mode = #tpu.pipeline_mode<synchronous>, transform_indices = @transform_2, window_bounds = array<i64: 3, 32, 128>}, {pipeline_mode = #tpu.pipeline_mode<synchronous>, transform_indices = @transform_3, window_bounds = array<i64: 3, 32, 128>}, {pipeline_mode = #tpu.pipeline_mode<synchronous>, transform_indices = @transform_4, window_bounds = array<i64: 1, 128>}, {transform_indices = @transform_5, window_bounds = array<i64: 1, 32, 128>}]} {
    %c0 = arith.constant 0 : index
    %c0_0 = arith.constant 0 : index
    %c0_1 = arith.constant 0 : index
    %c0_2 = arith.constant 0 : index
    %0 = vector.load %arg2[%c0, %c0_0, %c0_1, %c0_2] : memref<1x1x80x32xbf16, #tpu.memory_space<vmem>>, vector<1x1x32x32xbf16>
    %1 = vector.shape_cast %0 : vector<1x1x32x32xbf16> to vector<32x32xbf16>
    %c0_3 = arith.constant 0 : index
    %c0_4 = arith.constant 0 : index
    %c0_5 = arith.constant 0 : index
    %2 = vector.load %arg4[%c0_3, %c0_4, %c0_5] : memref<3x32x128xbf16, #tpu.memory_space<vmem>>, vector<1x32x128xbf16>
    %3 = vector.shape_cast %2 : vector<1x32x128xbf16> to vector<32x128xbf16>
    %cst = arith.constant dense<0.000000e+00> : vector<32x128xf32>
    %4 = tpu.matmul %1, %3, %cst {dimension_numbers = #tpu.dot_dimension_numbers<[1], [0], [0], [1], [0, 0, 1, 1], [], []>} : vector<32x32xbf16>, vector<32x128xbf16>, vector<32x128xf32> -> vector<32x128xf32>
    %c0_6 = arith.constant 0 : index
    %c0_7 = arith.constant 0 : index
    %5 = vector.load %arg8[%c0_6, %c0_7] : memref<32x128xf32, #tpu.memory_space<vmem>>, vector<32x128xf32>
    tpu.vector_store %arg8[%c0_6, %c0_7], %4 {strides = array<i32>} : memref<32x128xf32, #tpu.memory_space<vmem>>, vector<32x128xf32>,
    %c0_8 = arith.constant 0 : index
    %c0_9 = arith.constant 0 : index
    %c40 = arith.constant 40 : index
    %c0_10 = arith.constant 0 : index
    %6 = vector.load %arg2[%c0_8, %c0_9, %c40, %c0_10] : memref<1x1x80x32xbf16, #tpu.memory_space<vmem>>, vector<1x1x32x32xbf16>
    %7 = vector.shape_cast %6 : vector<1x1x32x32xbf16> to vector<32x32xbf16>
    %c1 = arith.constant 1 : index
    %c0_11 = arith.constant 0 : index
    %c0_12 = arith.constant 0 : index
    %8 = vector.load %arg4[%c1, %c0_11, %c0_12] : memref<3x32x128xbf16, #tpu.memory_space<vmem>>, vector<1x32x128xbf16>
    %9 = vector.shape_cast %8 : vector<1x32x128xbf16> to vector<32x128xbf16>
    %cst_13 = arith.constant dense<0.000000e+00> : vector<32x128xf32>
    %10 = tpu.matmul %7, %9, %cst_13 {dimension_numbers = #tpu.dot_dimension_numbers<[1], [0], [0], [1], [0, 0, 1, 1], [], []>} : vector<32x32xbf16>, vector<32x128xbf16>, vector<32x128xf32> -> vector<32x128xf32>
    %c0_14 = arith.constant 0 : index
    %c0_15 = arith.constant 0 : index
    %11 = vector.load %arg8[%c0_14, %c0_15] : memref<32x128xf32, #tpu.memory_space<vmem>>, vector<32x128xf32>
    %12 = arith.addf %11, %10 : vector<32x128xf32>
    %c0_16 = arith.constant 0 : index
    %c0_17 = arith.constant 0 : index
    %13 = vector.load %arg8[%c0_16, %c0_17] : memref<32x128xf32, #tpu.memory_space<vmem>>, vector<32x128xf32>
    tpu.vector_store %arg8[%c0_16, %c0_17], %12 {strides = array<i32>} : memref<32x128xf32, #tpu.memory_space<vmem>>, vector<32x128xf32>,
    %c0_18 = arith.constant 0 : index
    %c0_19 = arith.constant 0 : index
    %c8 = arith.constant 8 : index
    %c0_20 = arith.constant 0 : index
    %14 = vector.load %arg2[%c0_18, %c0_19, %c8, %c0_20] : memref<1x1x80x32xbf16, #tpu.memory_space<vmem>>, vector<1x1x32x32xbf16>
    %15 = vector.shape_cast %14 : vector<1x1x32x32xbf16> to vector<32x32xbf16>
    %c2 = arith.constant 2 : index
    %c0_21 = arith.constant 0 : index
    %c0_22 = arith.constant 0 : index
    %16 = vector.load %arg4[%c2, %c0_21, %c0_22] : memref<3x32x128xbf16, #tpu.memory_space<vmem>>, vector<1x32x128xbf16>
    %17 = vector.shape_cast %16 : vector<1x32x128xbf16> to vector<32x128xbf16>
    %cst_23 = arith.constant dense<0.000000e+00> : vector<32x128xf32>
    %18 = tpu.matmul %15, %17, %cst_23 {dimension_numbers = #tpu.dot_dimension_numbers<[1], [0], [0], [1], [0, 0, 1, 1], [], []>} : vector<32x32xbf16>, vector<32x128xbf16>, vector<32x128xf32> -> vector<32x128xf32>
    %c0_24 = arith.constant 0 : index
    %c0_25 = arith.constant 0 : index
    %19 = vector.load %arg8[%c0_24, %c0_25] : memref<32x128xf32, #tpu.memory_space<vmem>>, vector<32x128xf32>
    %20 = arith.addf %19, %18 : vector<32x128xf32>
    %c0_26 = arith.constant 0 : index
    %c0_27 = arith.constant 0 : index
    %21 = vector.load %arg8[%c0_26, %c0_27] : memref<32x128xf32, #tpu.memory_space<vmem>>, vector<32x128xf32>
    tpu.vector_store %arg8[%c0_26, %c0_27], %20 {strides = array<i32>} : memref<32x128xf32, #tpu.memory_space<vmem>>, vector<32x128xf32>,
    %c0_28 = arith.constant 0 : index
    %c0_29 = arith.constant 0 : index
    %c0_30 = arith.constant 0 : index
    %c0_31 = arith.constant 0 : index
    %22 = vector.load %arg3[%c0_28, %c0_29, %c0_30, %c0_31] : memref<1x1x80x32xbf16, #tpu.memory_space<vmem>>, vector<1x1x32x32xbf16>
    %23 = vector.shape_cast %22 : vector<1x1x32x32xbf16> to vector<32x32xbf16>
    %c0_32 = arith.constant 0 : index
    %c0_33 = arith.constant 0 : index
    %c0_34 = arith.constant 0 : index
    %24 = vector.load %arg5[%c0_32, %c0_33, %c0_34] : memref<3x32x128xbf16, #tpu.memory_space<vmem>>, vector<1x32x128xbf16>
    %25 = vector.shape_cast %24 : vector<1x32x128xbf16> to vector<32x128xbf16>
    %cst_35 = arith.constant dense<0.000000e+00> : vector<32x128xf32>
    %26 = tpu.matmul %23, %25, %cst_35 {dimension_numbers = #tpu.dot_dimension_numbers<[1], [0], [0], [1], [0, 0, 1, 1], [], []>} : vector<32x32xbf16>, vector<32x128xbf16>, vector<32x128xf32> -> vector<32x128xf32>
    %c0_36 = arith.constant 0 : index
    %c0_37 = arith.constant 0 : index
    %27 = vector.load %arg8[%c0_36, %c0_37] : memref<32x128xf32, #tpu.memory_space<vmem>>, vector<32x128xf32>
    %28 = arith.addf %27, %26 : vector<32x128xf32>
    %c0_38 = arith.constant 0 : index
    %c0_39 = arith.constant 0 : index
    %29 = vector.load %arg8[%c0_38, %c0_39] : memref<32x128xf32, #tpu.memory_space<vmem>>, vector<32x128xf32>
    tpu.vector_store %arg8[%c0_38, %c0_39], %28 {strides = array<i32>} : memref<32x128xf32, #tpu.memory_space<vmem>>, vector<32x128xf32>,
    %c0_40 = arith.constant 0 : index
    %c0_41 = arith.constant 0 : index
    %c40_42 = arith.constant 40 : index
    %c0_43 = arith.constant 0 : index
    %30 = vector.load %arg3[%c0_40, %c0_41, %c40_42, %c0_43] : memref<1x1x80x32xbf16, #tpu.memory_space<vmem>>, vector<1x1x32x32xbf16>
    %31 = vector.shape_cast %30 : vector<1x1x32x32xbf16> to vector<32x32xbf16>
    %c1_44 = arith.constant 1 : index
    %c0_45 = arith.constant 0 : index
    %c0_46 = arith.constant 0 : index
    %32 = vector.load %arg5[%c1_44, %c0_45, %c0_46] : memref<3x32x128xbf16, #tpu.memory_space<vmem>>, vector<1x32x128xbf16>
    %33 = vector.shape_cast %32 : vector<1x32x128xbf16> to vector<32x128xbf16>
    %cst_47 = arith.constant dense<0.000000e+00> : vector<32x128xf32>
    %34 = tpu.matmul %31, %33, %cst_47 {dimension_numbers = #tpu.dot_dimension_numbers<[1], [0], [0], [1], [0, 0, 1, 1], [], []>} : vector<32x32xbf16>, vector<32x128xbf16>, vector<32x128xf32> -> vector<32x128xf32>
    %c0_48 = arith.constant 0 : index
    %c0_49 = arith.constant 0 : index
    %35 = vector.load %arg8[%c0_48, %c0_49] : memref<32x128xf32, #tpu.memory_space<vmem>>, vector<32x128xf32>
    %36 = arith.addf %35, %34 : vector<32x128xf32>
    %c0_50 = arith.constant 0 : index
    %c0_51 = arith.constant 0 : index
    %37 = vector.load %arg8[%c0_50, %c0_51] : memref<32x128xf32, #tpu.memory_space<vmem>>, vector<32x128xf32>
    tpu.vector_store %arg8[%c0_50, %c0_51], %36 {strides = array<i32>} : memref<32x128xf32, #tpu.memory_space<vmem>>, vector<32x128xf32>,
    %c0_52 = arith.constant 0 : index
    %c0_53 = arith.constant 0 : index
    %c8_54 = arith.constant 8 : index
    %c0_55 = arith.constant 0 : index
    %38 = vector.load %arg3[%c0_52, %c0_53, %c8_54, %c0_55] : memref<1x1x80x32xbf16, #tpu.memory_space<vmem>>, vector<1x1x32x32xbf16>
    %39 = vector.shape_cast %38 : vector<1x1x32x32xbf16> to vector<32x32xbf16>
    %c2_56 = arith.constant 2 : index
    %c0_57 = arith.constant 0 : index
    %c0_58 = arith.constant 0 : index
    %40 = vector.load %arg5[%c2_56, %c0_57, %c0_58] : memref<3x32x128xbf16, #tpu.memory_space<vmem>>, vector<1x32x128xbf16>
    %41 = vector.shape_cast %40 : vector<1x32x128xbf16> to vector<32x128xbf16>
    %cst_59 = arith.constant dense<0.000000e+00> : vector<32x128xf32>
    %42 = tpu.matmul %39, %41, %cst_59 {dimension_numbers = #tpu.dot_dimension_numbers<[1], [0], [0], [1], [0, 0, 1, 1], [], []>} : vector<32x32xbf16>, vector<32x128xbf16>, vector<32x128xf32> -> vector<32x128xf32>
    %c0_60 = arith.constant 0 : index
    %c0_61 = arith.constant 0 : index
    %43 = vector.load %arg8[%c0_60, %c0_61] : memref<32x128xf32, #tpu.memory_space<vmem>>, vector<32x128xf32>
    %44 = arith.addf %43, %42 : vector<32x128xf32>
    %c0_62 = arith.constant 0 : index
    %c0_63 = arith.constant 0 : index
    %45 = vector.load %arg8[%c0_62, %c0_63] : memref<32x128xf32, #tpu.memory_space<vmem>>, vector<32x128xf32>
    tpu.vector_store %arg8[%c0_62, %c0_63], %44 {strides = array<i32>} : memref<32x128xf32, #tpu.memory_space<vmem>>, vector<32x128xf32>,
    %c0_64 = arith.constant 0 : index
    %c0_65 = arith.constant 0 : index
    %46 = vector.load %arg8[%c0_64, %c0_65] : memref<32x128xf32, #tpu.memory_space<vmem>>, vector<32x128xf32>
    %c0_66 = arith.constant 0 : index
    %c0_67 = arith.constant 0 : index
    %47 = vector.load %arg6[%c0_66, %c0_67] : memref<1x128xf32, #tpu.memory_space<vmem>>, vector<1x128xf32>
    %48 = vector.broadcast %47 : vector<1x128xf32> to vector<32x128xf32>
    %49 = arith.addf %46, %48 : vector<32x128xf32>
    %cst_68 = arith.constant 0.000000e+00 : f32
    %50 = vector.broadcast %cst_68 : f32 to vector<32x128xf32>
    %51 = arith.maximumf %49, %50 : vector<32x128xf32>
    %52 = arith.truncf %51 : vector<32x128xf32> to vector<32x128xbf16>
    %c0_69 = arith.constant 0 : index
    %c0_70 = arith.constant 0 : index
    %c0_71 = arith.constant 0 : index
    %53 = vector.load %arg7[%c0_69, %c0_70, %c0_71] : memref<1x32x128xbf16, #tpu.memory_space<vmem>>, vector<1x32x128xbf16>
    %54 = vector.shape_cast %53 : vector<1x32x128xbf16> to vector<32x128xbf16>
    %55 = vector.shape_cast %52 : vector<32x128xbf16> to vector<1x32x128xbf16>
    tpu.vector_store %arg7[%c0_69, %c0_70, %c0_71], %55 {strides = array<i32>} : memref<1x32x128xbf16, #tpu.memory_space<vmem>>, vector<1x32x128xbf16>,
    return
  }
  func.func @transform_0(%arg0: i32, %arg1: i32) -> (i32, i32, i32, i32) {
    %c0_i32 = arith.constant 0 : i32
    %c0_i32_0 = arith.constant 0 : i32
    %c0_i32_1 = arith.constant 0 : i32
    return %arg0, %arg1, %c0_i32, %c0_i32_0 : i32, i32, i32, i32
  }
  func.func @transform_1(%arg0: i32, %arg1: i32) -> (i32, i32, i32, i32) {
    %c0_i32 = arith.constant 0 : i32
    %c0_i32_0 = arith.constant 0 : i32
    %c0_i32_1 = arith.constant 0 : i32
    return %arg0, %arg1, %c0_i32, %c0_i32_0 : i32, i32, i32, i32
  }
  func.func @transform_2(%arg0: i32, %arg1: i32) -> (i32, i32, i32) {
    %c0_i32 = arith.constant 0 : i32
    %c0_i32_0 = arith.constant 0 : i32
    %c0_i32_1 = arith.constant 0 : i32
    %c0_i32_2 = arith.constant 0 : i32
    return %c0_i32, %c0_i32_0, %c0_i32_1 : i32, i32, i32
  }
  func.func @transform_3(%arg0: i32, %arg1: i32) -> (i32, i32, i32) {
    %c0_i32 = arith.constant 0 : i32
    %c0_i32_0 = arith.constant 0 : i32
    %c0_i32_1 = arith.constant 0 : i32
    %c0_i32_2 = arith.constant 0 : i32
    return %c0_i32, %c0_i32_0, %c0_i32_1 : i32, i32, i32
  }
  func.func @transform_4(%arg0: i32, %arg1: i32) -> (i32, i32) {
    %c0_i32 = arith.constant 0 : i32
    %c0_i32_0 = arith.constant 0 : i32
    %c0_i32_1 = arith.constant 0 : i32
    return %c0_i32, %c0_i32_0 : i32, i32
  }
  func.func @transform_5(%arg0: i32, %arg1: i32) -> (i32, i32, i32) {
    %c0_i32 = arith.constant 0 : i32
    %c0_i32_0 = arith.constant 0 : i32
    return %arg0, %arg1, %c0_i32 : i32, i32, i32
  }
}

module attributes {stable_mosaic.version = 11 : i64} {
  func.func @kernel(%arg0: i32, %arg1: i32, %arg2: memref<1x1x32x16xbf16, #tpu.memory_space<vmem>>, %arg3: memref<1x16x128xbf16, #tpu.memory_space<vmem>>, %arg4: memref<1x128xf32, #tpu.memory_space<vmem>>, %arg5: memref<1x32x128xbf16, #tpu.memory_space<vmem>>) attributes {dimension_semantics = [#tpu.dimension_semantics<parallel>, #tpu.dimension_semantics<parallel>], iteration_bounds = array<i64: 2, 1>, scalar_prefetch = 0 : i64, scratch_operands = 0 : i64, tpu.core_type = #tpu.core_type<tc>, window_params = [{transform_indices = @transform_0, window_bounds = array<i64: 1, 1, 32, 16>}, {pipeline_mode = #tpu.pipeline_mode<synchronous>, transform_indices = @transform_1, window_bounds = array<i64: 1, 16, 128>}, {pipeline_mode = #tpu.pipeline_mode<synchronous>, transform_indices = @transform_2, window_bounds = array<i64: 1, 128>}, {transform_indices = @transform_3, window_bounds = array<i64: 1, 32, 128>}]} {
    %c0 = arith.constant 0 : index
    %c0_0 = arith.constant 0 : index
    %c0_1 = arith.constant 0 : index
    %c0_2 = arith.constant 0 : index
    %0 = vector.load %arg2[%c0, %c0_0, %c0_1, %c0_2] : memref<1x1x32x16xbf16, #tpu.memory_space<vmem>>, vector<1x1x32x16xbf16>
    %1 = vector.shape_cast %0 : vector<1x1x32x16xbf16> to vector<32x16xbf16>
    %c0_3 = arith.constant 0 : index
    %c0_4 = arith.constant 0 : index
    %c0_5 = arith.constant 0 : index
    %2 = vector.load %arg3[%c0_3, %c0_4, %c0_5] : memref<1x16x128xbf16, #tpu.memory_space<vmem>>, vector<1x16x128xbf16>
    %3 = vector.shape_cast %2 : vector<1x16x128xbf16> to vector<16x128xbf16>
    %cst = arith.constant dense<0.000000e+00> : vector<32x128xf32>
    %4 = tpu.matmul %1, %3, %cst {dimension_numbers = #tpu.dot_dimension_numbers<[1], [0], [0], [1], [0, 0, 1, 1], [], []>} : vector<32x16xbf16>, vector<16x128xbf16>, vector<32x128xf32> -> vector<32x128xf32>
    %c0_6 = arith.constant 0 : index
    %c0_7 = arith.constant 0 : index
    %5 = vector.load %arg4[%c0_6, %c0_7] : memref<1x128xf32, #tpu.memory_space<vmem>>, vector<1x128xf32>
    %6 = vector.broadcast %5 : vector<1x128xf32> to vector<32x128xf32>
    %7 = arith.addf %4, %6 : vector<32x128xf32>
    %cst_8 = arith.constant 0.000000e+00 : f32
    %8 = vector.broadcast %cst_8 : f32 to vector<32x128xf32>
    %9 = arith.maximumf %7, %8 : vector<32x128xf32>
    %10 = arith.truncf %9 : vector<32x128xf32> to vector<32x128xbf16>
    %c0_9 = arith.constant 0 : index
    %c0_10 = arith.constant 0 : index
    %c0_11 = arith.constant 0 : index
    %11 = vector.load %arg5[%c0_9, %c0_10, %c0_11] : memref<1x32x128xbf16, #tpu.memory_space<vmem>>, vector<1x32x128xbf16>
    %12 = vector.shape_cast %11 : vector<1x32x128xbf16> to vector<32x128xbf16>
    %13 = vector.shape_cast %10 : vector<32x128xbf16> to vector<1x32x128xbf16>
    tpu.vector_store %arg5[%c0_9, %c0_10, %c0_11], %13 {strides = array<i32>} : memref<1x32x128xbf16, #tpu.memory_space<vmem>>, vector<1x32x128xbf16>,
    return
  }
  func.func @transform_0(%arg0: i32, %arg1: i32) -> (i32, i32, i32, i32) {
    %c0_i32 = arith.constant 0 : i32
    %c0_i32_0 = arith.constant 0 : i32
    %c0_i32_1 = arith.constant 0 : i32
    return %arg0, %arg1, %c0_i32, %c0_i32_0 : i32, i32, i32, i32
  }
  func.func @transform_1(%arg0: i32, %arg1: i32) -> (i32, i32, i32) {
    %c0_i32 = arith.constant 0 : i32
    %c0_i32_0 = arith.constant 0 : i32
    %c0_i32_1 = arith.constant 0 : i32
    %c0_i32_2 = arith.constant 0 : i32
    return %c0_i32, %c0_i32_0, %c0_i32_1 : i32, i32, i32
  }
  func.func @transform_2(%arg0: i32, %arg1: i32) -> (i32, i32) {
    %c0_i32 = arith.constant 0 : i32
    %c0_i32_0 = arith.constant 0 : i32
    %c0_i32_1 = arith.constant 0 : i32
    return %c0_i32, %c0_i32_0 : i32, i32
  }
  func.func @transform_3(%arg0: i32, %arg1: i32) -> (i32, i32, i32) {
    %c0_i32 = arith.constant 0 : i32
    %c0_i32_0 = arith.constant 0 : i32
    return %arg0, %arg1, %c0_i32 : i32, i32, i32
  }
}

</mosaic_0001>

<llo_original>
// kernel: _lambda_.5
$region0: #{_lambda_.5}
  #allocation0 [shape = 'u32[]', space=smem, size = 0x4, offset = 0x4, fixed_abs, tag = 'smem constant byte address 0x4 - core index']
  #allocation1 [shape = 'u32[144,128]{1,0:T(1,128)}', space=vmem, size = 0x12000, scoped, tag = 'internal scratch']
  %s0 = inlined_call_operand.vmem [shape: bf16[2,1,64,48], index: 0, kind: input, shape index: {}]
  %s1 = inlined_call_operand.vmem [shape: bf16[1,48,128], index: 1, kind: input, shape index: {}]
  %s2 = inlined_call_operand.vmem [shape: f32[1,128], index: 2, kind: input, shape index: {}]
  %s3 = inlined_call_operand.vmem [shape: bf16[2,64,128], index: 3, kind: output, shape index: {}]
  %s4 = sld [smem:[#allocation0]]
  $region45: #{_lambda_.5} parent=0
    _
  %s6 = ssub.s32 1, %s4
  %s7 = scalar_select 0, %s6, %s4
  loop: start=0, step=1, limit=4
  $region2: #{_lambda_.5} parent=0 // loop_pre_header
    _
  $region3: #{_lambda_.5} parent=0 // loop_header
    %s9 = sphi 0, %s13
    %p10 = scmp.ge.s32.totalorder %s9, 4
    %s16 = sphi 0, %s28
    %s17 = sphi 0, %s24
    %s18 = sphi 0, %s16
    %s19 = sphi 0, %s17
    %s20 = sphi 0, %s18
    %s21 = sphi 0, %s19
    %s33 = sphi 0, %s35
    %s36 = sphi 0, %s33
    %s37 = sphi 0, %s36
    %s53 = sphi 0, %s37
    %s57 = sphi 0, %s57
    %s59 = sphi 0, %s57
    %s60 = sphi 0, %s59
    %s74 = sphi 0, %s60
    %s78 = sphi 0, %s78
    %s80 = sphi 0, %s78
    %s81 = sphi 0, %s80
    %s95 = sphi 0, %s81
    %s103 = sphi 0, %s105
    %s106 = sphi 0, %s103
    %s107 = sphi 0, %s106
    %s123 = sphi 0, %s107
  $region4: #{_lambda_.5} parent=0 // loop_header_branch
    %12 = sbr.rel (%p10) target = $region8
  $region5: #{_lambda_.5} parent=0 // loop_body
    %s14 = ssub.s32 %s9, 1
    %s15 = ssub.s32 %s9, 2
    %s22 = sadd.s32 1, %s17
    %p23 = scmp.ge.s32.totalorder %s22, 1
    %s24 = scalar_select %p23, 0, %s22
    %s25 = sadd.s32 1, %s16
    %s26 = scalar_select %p23, %s25, %s16
    %p27 = scmp.ge.s32.totalorder %s26, 2
    %s28 = scalar_select %p27, 0, %s26
    %s29 = ssub.s32 %s16, %s28
    %s30 = ssub.s32 %s17, %s24
    %s31 = sor.u32 %s29, %s30
    %p32 = scmp.eq.s32.totalorder %s31, 0
    %s34 = sadd.s32 %s33, 1
    %s35 = scalar_select %p32, %s33, %s34
    %p38 = pneg %p32
    %p39 = scmp.eq.s32.totalorder %s9, 1
    %p40 = por %p38, %p39
    %p41 = scmp.ne.s32.totalorder %s33, %s36
    %p42 = scmp.eq.s32.totalorder %s9, 0
    %p43 = por %p41, %p42
    %p44 = scmp.ne.s32.totalorder %s33, %s36
    %p45 = scmp.eq.s32.totalorder %s14, 1
    %p46 = por %p44, %p45
    %p47 = scmp.ne.s32.totalorder %s36, %s37
    %p48 = scmp.eq.s32.totalorder %s14, 0
    %p49 = por %p47, %p48
    %p50 = scmp.ne.s32.totalorder %s36, %s37
    %p51 = scmp.eq.s32.totalorder %s15, 1
    %p52 = por %p50, %p51
    %p54 = scmp.ne.s32.totalorder %s37, %s53
    %p55 = scmp.eq.s32.totalorder %s15, 0
    %p56 = por %p54, %p55
    %s58 = sadd.s32 %s57, 1
    %p61 = scmp.eq.s32.totalorder %s9, 1
    %p62 = scmp.ne.s32.totalorder %s57, %s59
    %p63 = scmp.eq.s32.totalorder %s9, 0
    %p64 = por %p62, %p63
    %p65 = scmp.ne.s32.totalorder %s57, %s59
    %p66 = scmp.eq.s32.totalorder %s14, 1
    %p67 = por %p65, %p66
    %p68 = scmp.ne.s32.totalorder %s59, %s60
    %p69 = scmp.eq.s32.totalorder %s14, 0
    %p70 = por %p68, %p69
    %p71 = scmp.ne.s32.totalorder %s59, %s60
    %p72 = scmp.eq.s32.totalorder %s15, 1
    %p73 = por %p71, %p72
    %p75 = scmp.ne.s32.totalorder %s60, %s74
    %p76 = scmp.eq.s32.totalorder %s15, 0
    %p77 = por %p75, %p76
    %s79 = sadd.s32 %s78, 1
    %p82 = scmp.eq.s32.totalorder %s9, 1
    %p83 = scmp.ne.s32.totalorder %s78, %s80
    %p84 = scmp.eq.s32.totalorder %s9, 0
    %p85 = por %p83, %p84
    %p86 = scmp.ne.s32.totalorder %s78, %s80
    %p87 = scmp.eq.s32.totalorder %s14, 1
    %p88 = por %p86, %p87
    %p89 = scmp.ne.s32.totalorder %s80, %s81
    %p90 = scmp.eq.s32.totalorder %s14, 0
    %p91 = por %p89, %p90
    %p92 = scmp.ne.s32.totalorder %s80, %s81
    %p93 = scmp.eq.s32.totalorder %s15, 1
    %p94 = por %p92, %p93
    %p96 = scmp.ne.s32.totalorder %s81, %s95
    %p97 = scmp.eq.s32.totalorder %s15, 0
    %p98 = por %p96, %p97
    %s99 = ssub.s32 %s16, %s28
    %s100 = ssub.s32 %s17, %s24
    %s101 = sor.u32 %s99, %s100
    %p102 = scmp.eq.s32.totalorder %s101, 0
    %s104 = sadd.s32 %s103, 1
    %s105 = scalar_select %p102, %s103, %s104
    %p108 = pneg %p102
    %p109 = scmp.eq.s32.totalorder %s9, 1
    %p110 = por %p108, %p109
    %p111 = scmp.ne.s32.totalorder %s103, %s106
    %p112 = scmp.eq.s32.totalorder %s9, 0
    %p113 = por %p111, %p112
    %p114 = scmp.ne.s32.totalorder %s103, %s106
    %p115 = scmp.eq.s32.totalorder %s14, 1
    %p116 = por %p114, %p115
    %p117 = scmp.ne.s32.totalorder %s106, %s107
    %p118 = scmp.eq.s32.totalorder %s14, 0
    %p119 = por %p117, %p118
    %p120 = scmp.ne.s32.totalorder %s106, %s107
    %p121 = scmp.eq.s32.totalorder %s15, 1
    %p122 = por %p120, %p121
    %p124 = scmp.ne.s32.totalorder %s107, %s123
    %p125 = scmp.eq.s32.totalorder %s15, 0
    %p126 = por %p124, %p125
    %p127 = scmp.le.s32.totalorder 1, %s9
    %p128 = scmp.lt.s32.totalorder %s9, 3
    %p129 = pnand %p127, %p128
    %p130 = pneg %p129
    // Predicated region
    $region9: #{_lambda_.5} parent=5 // pred_check
      _
    $region10: #{_lambda_.5} parent=5 // pred_check_branch
      %132 = sbr.rel (%p129) target = $region12
    $region11: #{_lambda_.5} parent=5 // pred_region
      %s133 = ssub.s32 %s9, 1
      // Predicated region
      $region13: #{_lambda_.5} parent=11 // pred_check
        %p134 = pneg %p70
      $region14: #{_lambda_.5} parent=11 // pred_check_branch
        %136 = sbr.rel (%p134) target = $region16
      $region15: #{_lambda_.5} parent=11 // pred_region
        _
      $region16: #{_lambda_.5} parent=11 // pred_fallthru
        _
      // Predicated region
      $region17: #{_lambda_.5} parent=11 // pred_check
        %p137 = pneg %p91
      $region18: #{_lambda_.5} parent=11 // pred_check_branch
        %139 = sbr.rel (%p137) target = $region20
      $region19: #{_lambda_.5} parent=11 // pred_region
        _
      $region20: #{_lambda_.5} parent=11 // pred_fallthru
        _
    $region12: #{_lambda_.5} parent=5 // pred_fallthru
      _
    %p140 = scmp.lt.s32.totalorder %s9, 2
    // Predicated region
    $region21: #{_lambda_.5} parent=5 // pred_check
      %p141 = pneg %p140
    $region22: #{_lambda_.5} parent=5 // pred_check_branch
      %143 = sbr.rel (%p141) target = $region24
    $region23: #{_lambda_.5} parent=5 // pred_region
      // Predicated region
      $region25: #{_lambda_.5} parent=23 // pred_check
        %p144 = pneg %p43
      $region26: #{_lambda_.5} parent=23 // pred_check_branch
        %146 = sbr.rel (%p144) target = $region28
      $region27: #{_lambda_.5} parent=23 // pred_region
        %p147 = scmp.lt.s32.totalorder %s16, 1
        %s148 = scalar_select %p147, %s16, 1
        %p149 = scmp.lt.s32.totalorder %s17, 0
        %s150 = scalar_select %p149, %s17, 0
        %s151 = smul.addr %s150, 8
        %s152 = smul.addr %s148, 8
        %s153 = sadd.s32 %s151, %s152
        %s154 = smul.addr %s153, 4
        %s155 = scalar_lea.vmem %s0, %s154
      $region28: #{_lambda_.5} parent=23 // pred_fallthru
        _
    $region24: #{_lambda_.5} parent=5 // pred_fallthru
      _
    %p156 = scmp.le.s32.totalorder 1, %s9
    %p157 = scmp.lt.s32.totalorder %s9, 3
    %p158 = pnand %p156, %p157
    %p159 = pneg %p158
    // Predicated region
    $region29: #{_lambda_.5} parent=5 // pred_check
      _
    $region30: #{_lambda_.5} parent=5 // pred_check_branch
      %161 = sbr.rel (%p158) target = $region32
    $region31: #{_lambda_.5} parent=5 // pred_region
      %s162 = ssub.s32 %s9, 1
      %p163 = scmp.lt.s32.totalorder %s18, 1
      %s164 = scalar_select %p163, %s18, 1
      %p165 = scmp.lt.s32.totalorder %s19, 0
      %s166 = scalar_select %p165, %s19, 0
      %s167 = smul.addr %s166, 8
      %s168 = smul.addr %s164, 8
      %s169 = sadd.s32 %s167, %s168
      %s170 = smul.addr %s169, 4
      %s171 = scalar_lea.vmem %s0, %s170
      %p172 = pneg %p49
      %p173 = pneg %p46
      %p174 = pneg %p70
      %p175 = pneg %p67
      %p176 = pneg %p91
      %p177 = pneg %p88
      %p178 = pneg %p119
      %p179 = pneg %p116
      %s180 = smul.u32 8, %s19
      %p181 = scmp.lt.s32.totalorder %s18, 1
      %s182 = scalar_select %p181, %s18, 1
      %p183 = scmp.lt.s32.totalorder %s180, 7
      %s184 = scalar_select %p183, %s180, 7
      %s185 = smul.addr %s182, 8
      %s186 = sadd.s32 %s184, %s185
      %s187 = smul.addr %s186, 4
      %s188 = scalar_lea.vmem %s3, %s187
      %p189 = scmp.lt.s32.totalorder %s18, 1
      %s190 = scalar_select %p189, %s18, 1
      %p191 = scmp.lt.s32.totalorder %s19, 0
      %s192 = scalar_select %p191, %s19, 0
      %s193 = smul.addr %s192, 8
      %s194 = smul.addr %s190, 8
      %s195 = sadd.s32 %s193, %s194
      %s196 = smul.addr %s195, 4
      %s197 = scalar_lea.vmem %s0, %s196
      %s198 = smul.u32 8, %s19
      %p199 = scmp.lt.s32.totalorder %s18, 1
      %s200 = scalar_select %p199, %s18, 1
      %p201 = scmp.lt.s32.totalorder %s198, 7
      %s202 = scalar_select %p201, %s198, 7
      %s203 = smul.addr %s200, 8
      %s204 = sadd.s32 %s202, %s203
      %s205 = smul.addr %s204, 4
      %s206 = scalar_lea.vmem %s3, %s205
      %s207 = smul.u32 8, %s19
      %v209 = vld [vmem:[%s197] sm:$0xf]
      %v210 = vld [vmem:[%s197 + $0x4] sm:$0xf]
      %v211 = vld [vmem:[%s197 + $0x8] sm:$0xf]
      %v212 = vld [vmem:[%s197 + $0xc] sm:$0xf]
      %v213 = vld [vmem:[%s197 + $0x10] sm:$0xf]
      %v214 = vld [vmem:[%s197 + $0x14] sm:$0xf]
      %v215 = vld [vmem:[%s197 + $0x18] sm:$0xf]
      %v216 = vld [vmem:[%s197 + $0x1c] sm:$0xf]
      %v217 = vld [vmem:[%s1] sm:$0xf]
      %v218 = vld [vmem:[%s1 + $0x4] sm:$0xf]
      %v219 = vld [vmem:[%s1 + $0x8] sm:$0xf]
      %v220 = vld [vmem:[%s1 + $0xc] sm:$0xf]
      %v221 = vld [vmem:[%s1 + $0x10] sm:$0xf]
      %v222 = vld [vmem:[%s1 + $0x14] sm:$0xf]
      %v223 = vld [vmem:[%s2] sm:$0x1]
      %v225 = vlaneseq
      %v226 = vshrl.u32 %v225, 7
      %v227 = vsub.s32 0, %v226
      %v228 = vrot.slane %v223, %v227
      %v238 = vunpack.c.l.b16 %v209
      %v239 = vunpack.c.l.b16 %v210
      %v240 = vunpack.c.l.b16 %v211
      %v241 = vunpack.c.l.b16 %v212
      %v242 = vunpack.c.l.b16 %v213
      %v243 = vunpack.c.l.b16 %v214
      %v244 = vunpack.c.l.b16 %v215
      %v245 = vunpack.c.l.b16 %v216
      %v246 = vpack.c.b16 %v239, %v238
      %v247 = vpack.c.b16 %v241, %v240
      %v248 = vpack.c.b16 %v243, %v242
      %v249 = vpack.c.b16 %v245, %v244
      %v256 = vunpack.c.l.b16 %v217
      %v257 = vunpack.c.l.b16 %v218
      %v258 = vunpack.c.l.b16 %v219
      %v259 = vunpack.c.l.b16 %v220
      %v260 = vunpack.c.l.b16 %v221
      %v261 = vunpack.c.l.b16 %v222
      %v262 = vpack.c.b16 %v257, %v256
      %v263 = vpack.c.b16 %v259, %v258
      %v264 = vpack.c.b16 %v261, %v260
      %vm268 = vcmask 392192
      %v270 = vsel %vm268, %v246, 0
      %v273 = vsel %vm268, %v247, 0
      %v276 = vsel %vm268, %v248, 0
      %v279 = vsel %vm268, %v249, 0
      %281 = vmatprep.subr.bf16.mxu0 0
      %282 = vmatpush1.bf16.msra.mxu0 %v262
      %283 = vmatprep.subr.bf16.mxu0 0
      %284 = vmatpush1.bf16.msra.mxu0 %v263
      %285 = vmatprep.subr.bf16.mxu0 0
      %286 = vmatpush1.bf16.msra.mxu0 %v264
      %287 = vmatprep.subr.bf16.mxu0 0
      %288 = vmatpush1.bf16.msra.mxu0 0
      %289 = vmatprep.subr.bf16.mxu0 0
      %290 = vmatpush1.bf16.msra.mxu0 0
      %291 = vmatprep.subr.bf16.mxu0 0
      %292 = vmatpush1.bf16.msra.mxu0 0
      %293 = vmatprep.subr.bf16.mxu0 0
      %294 = vmatpush1.bf16.msra.mxu0 0
      %295 = vmatprep.subr.bf16.mxu0 0
      %296 = vmatpush1.bf16.msra.mxu0 0
      %297 = vmatprep.subr.bf16.mxu0 0
      %298 = vmatpush1.bf16.msra.mxu0 0
      %299 = vmatprep.subr.bf16.mxu0 0
      %300 = vmatpush1.bf16.msra.mxu0 0
      %301 = vmatprep.subr.bf16.mxu0 0
      %302 = vmatpush1.bf16.msra.mxu0 0
      %303 = vmatprep.subr.bf16.mxu0 0
      %304 = vmatpush1.bf16.msra.mxu0 0
      %305 = vmatprep.subr.bf16.mxu0 0
      %306 = vmatpush1.bf16.msra.mxu0 0
      %307 = vmatprep.subr.bf16.mxu0 0
      %308 = vmatpush1.bf16.msra.mxu0 0
      %309 = vmatprep.subr.bf16.mxu0 0
      %310 = vmatpush1.bf16.msra.mxu0 0
      %311 = vmatprep.subr.bf16.mxu0 0
      %312 = vmatpush1.bf16.msra.mxu0 0
      %313 = vmatprep.mubr.bf16.mxu0 0
      %314 = vmatmul.mubr.bf16.gmra.mrb[0].mxu0 %v270
      %v315 = vpop.f32.mrb[0].mxu0
      %v316 = vadd.f32 %v228, %v315
      %v317 = vpop.f32.mrb[0].mxu0
      %v318 = vpop.f32.mrb[0].mxu0
      %v319 = vadd.f32 %v228, %v318
      %v320 = vpop.f32.mrb[0].mxu0
      %321 = vmatprep.mubr.bf16.mxu0 0
      %322 = vmatmul.mubr.bf16.gmra.mrb[0].mxu0 %v273
      %v323 = vpop.f32.mrb[0].mxu0
      %v324 = vadd.f32 %v228, %v323
      %v325 = vpop.f32.mrb[0].mxu0
      %v326 = vpop.f32.mrb[0].mxu0
      %v327 = vadd.f32 %v228, %v326
      %v328 = vpop.f32.mrb[0].mxu0
      %329 = vmatprep.mubr.bf16.mxu0 0
      %330 = vmatmul.mubr.bf16.gmra.mrb[0].mxu0 %v276
      %v331 = vpop.f32.mrb[0].mxu0
      %v332 = vadd.f32 %v228, %v331
      %v333 = vpop.f32.mrb[0].mxu0
      %v334 = vpop.f32.mrb[0].mxu0
      %v335 = vadd.f32 %v228, %v334
      %v336 = vpop.f32.mrb[0].mxu0
      %337 = vmatprep.mubr.bf16.mxu0 0
      %338 = vmatmul.mubr.bf16.gmra.mrb[0].mxu0 %v279
      %v339 = vpop.f32.mrb[0].mxu0
      %v340 = vadd.f32 %v228, %v339
      %v341 = vpop.f32.mrb[0].mxu0
      %v342 = vpop.f32.mrb[0].mxu0
      %v343 = vadd.f32 %v228, %v342
      %v344 = vpop.f32.mrb[0].mxu0
      %345 = vdwg.mxu0
      %v346 = vmax.f32 %v316, 0.0
      %v347 = vmax.f32 %v319, 0.0
      %v348 = vmax.f32 %v324, 0.0
      %v349 = vmax.f32 %v327, 0.0
      %v350 = vmax.f32 %v332, 0.0
      %v351 = vmax.f32 %v335, 0.0
      %v352 = vmax.f32 %v340, 0.0
      %v353 = vmax.f32 %v343, 0.0
      %v354 = vpack.c.bf16 %v347, %v346
      %v355 = vpack.c.bf16 %v349, %v348
      %v356 = vpack.c.bf16 %v351, %v350
      %v357 = vpack.c.bf16 %v353, %v352
      %v362 = vunpack.c.l.b16 %v354
      %v363 = vunpack.c.h.b16 %v354
      %v364 = vunpack.c.l.b16 %v355
      %v365 = vunpack.c.h.b16 %v355
      %v366 = vunpack.c.l.b16 %v356
      %v367 = vunpack.c.h.b16 %v356
      %v368 = vunpack.c.l.b16 %v357
      %v369 = vunpack.c.h.b16 %v357
      %v370 = vpack.c.b16 %v362, %v362
      %v371 = vpack.c.b16 %v363, %v363
      %v372 = vpack.c.b16 %v364, %v364
      %v373 = vpack.c.b16 %v365, %v365
      %v374 = vpack.c.b16 %v366, %v366
      %v375 = vpack.c.b16 %v367, %v367
      %v376 = vpack.c.b16 %v368, %v368
      %v377 = vpack.c.b16 %v369, %v369
      %386 = vst [vmem:[%s206] sm:$0xf] %v370
      %387 = vst [vmem:[%s206 + $0x4] sm:$0xf] %v371
      %388 = vst [vmem:[%s206 + $0x8] sm:$0xf] %v372
      %389 = vst [vmem:[%s206 + $0xc] sm:$0xf] %v373
      %390 = vst [vmem:[%s206 + $0x10] sm:$0xf] %v374
      %391 = vst [vmem:[%s206 + $0x14] sm:$0xf] %v375
      %392 = vst [vmem:[%s206 + $0x18] sm:$0xf] %v376
      %393 = vst [vmem:[%s206 + $0x1c] sm:$0xf] %v377
      %s394 = smul.u32 8, %s19
      %p395 = scmp.lt.s32.totalorder %s18, 1
      %s396 = scalar_select %p395, %s18, 1
      %p397 = scmp.lt.s32.totalorder %s394, 7
      %s398 = scalar_select %p397, %s394, 7
      %s399 = smul.addr %s396, 8
      %s400 = sadd.s32 %s398, %s399
      %s401 = smul.addr %s400, 4
      %s402 = scalar_lea.vmem %s3, %s401
      // Predicated region
      $region33: #{_lambda_.5} parent=31 // pred_check
        %p403 = pneg %p116
      $region34: #{_lambda_.5} parent=31 // pred_check_branch
        %405 = sbr.rel (%p403) target = $region36
      $region35: #{_lambda_.5} parent=31 // pred_region
        %s406 = smul.u32 8, %s19
      $region36: #{_lambda_.5} parent=31 // pred_fallthru
        _
    $region32: #{_lambda_.5} parent=5 // pred_fallthru
      _
    %p407 = scmp.le.s32.totalorder 2, %s9
    // Predicated region
    $region37: #{_lambda_.5} parent=5 // pred_check
      %p408 = pneg %p407
    $region38: #{_lambda_.5} parent=5 // pred_check_branch
      %410 = sbr.rel (%p408) target = $region40
    $region39: #{_lambda_.5} parent=5 // pred_region
      %s411 = ssub.s32 %s9, 2
      // Predicated region
      $region41: #{_lambda_.5} parent=39 // pred_check
        %p412 = pneg %p122
      $region42: #{_lambda_.5} parent=39 // pred_check_branch
        %414 = sbr.rel (%p412) target = $region44
      $region43: #{_lambda_.5} parent=39 // pred_region
        %s415 = smul.u32 8, %s21
        %p416 = scmp.lt.s32.totalorder %s20, 1
        %s417 = scalar_select %p416, %s20, 1
        %p418 = scmp.lt.s32.totalorder %s415, 7
        %s419 = scalar_select %p418, %s415, 7
        %s420 = smul.addr %s417, 8
        %s421 = sadd.s32 %s419, %s420
        %s422 = smul.addr %s421, 4
        %s423 = scalar_lea.vmem %s3, %s422
      $region44: #{_lambda_.5} parent=39 // pred_fallthru
        _
    $region40: #{_lambda_.5} parent=5 // pred_fallthru
      _
  $region6: #{_lambda_.5} parent=0 // loop_footer
    %s13 = sadd.s32 1, %s9
  $region7: #{_lambda_.5} parent=0 // loop_footer_branch
    %8 = sbr.rel target = $region3
  $region8: #{_lambda_.5} parent=0 // loop_exit
    _

// kernel: _lambda_.6
$region0: #{_lambda_.6}
  #allocation0 [shape = 'u32[]', space=smem, size = 0x4, offset = 0x4, fixed_abs, tag = 'smem constant byte address 0x4 - core index']
  #allocation1 [shape = 'u32[144,128]{1,0:T(1,128)}', space=vmem, size = 0x12000, scoped, tag = 'internal scratch']
  #allocation2 [shape = 'f32[64,128]{1,0:T(8,128)}', space=vmem, size = 0x8000, scoped, tag = 'scratch operand']
  %s0 = inlined_call_operand.vmem [shape: bf16[2,1,72,16], index: 0, kind: input, shape index: {}]
  %s1 = inlined_call_operand.vmem [shape: bf16[2,16,128], index: 1, kind: input, shape index: {}]
  %s2 = inlined_call_operand.vmem [shape: f32[1,128], index: 2, kind: input, shape index: {}]
  %s3 = inlined_call_operand.vmem [shape: bf16[2,64,128], index: 3, kind: output, shape index: {}]
  %s4 = sld [smem:[#allocation0]]
  $region45: #{_lambda_.6} parent=0
    _
  %s6 = ssub.s32 1, %s4
  %s7 = scalar_select 0, %s6, %s4
  loop: start=0, step=1, limit=4
  $region2: #{_lambda_.6} parent=0 // loop_pre_header
    _
  $region3: #{_lambda_.6} parent=0 // loop_header
    %s9 = sphi 0, %s13
    %p10 = scmp.ge.s32.totalorder %s9, 4
    %s16 = sphi 0, %s28
    %s17 = sphi 0, %s24
    %s18 = sphi 0, %s16
    %s19 = sphi 0, %s17
    %s20 = sphi 0, %s18
    %s21 = sphi 0, %s19
    %s33 = sphi 0, %s35
    %s36 = sphi 0, %s33
    %s37 = sphi 0, %s36
    %s53 = sphi 0, %s37
    %s57 = sphi 0, %s57
    %s59 = sphi 0, %s57
    %s60 = sphi 0, %s59
    %s74 = sphi 0, %s60
    %s78 = sphi 0, %s78
    %s80 = sphi 0, %s78
    %s81 = sphi 0, %s80
    %s95 = sphi 0, %s81
    %s103 = sphi 0, %s105
    %s106 = sphi 0, %s103
    %s107 = sphi 0, %s106
    %s123 = sphi 0, %s107
  $region4: #{_lambda_.6} parent=0 // loop_header_branch
    %12 = sbr.rel (%p10) target = $region8
  $region5: #{_lambda_.6} parent=0 // loop_body
    %s14 = ssub.s32 %s9, 1
    %s15 = ssub.s32 %s9, 2
    %s22 = sadd.s32 1, %s17
    %p23 = scmp.ge.s32.totalorder %s22, 1
    %s24 = scalar_select %p23, 0, %s22
    %s25 = sadd.s32 1, %s16
    %s26 = scalar_select %p23, %s25, %s16
    %p27 = scmp.ge.s32.totalorder %s26, 2
    %s28 = scalar_select %p27, 0, %s26
    %s29 = ssub.s32 %s16, %s28
    %s30 = ssub.s32 %s17, %s24
    %s31 = sor.u32 %s29, %s30
    %p32 = scmp.eq.s32.totalorder %s31, 0
    %s34 = sadd.s32 %s33, 1
    %s35 = scalar_select %p32, %s33, %s34
    %p38 = pneg %p32
    %p39 = scmp.eq.s32.totalorder %s9, 1
    %p40 = por %p38, %p39
    %p41 = scmp.ne.s32.totalorder %s33, %s36
    %p42 = scmp.eq.s32.totalorder %s9, 0
    %p43 = por %p41, %p42
    %p44 = scmp.ne.s32.totalorder %s33, %s36
    %p45 = scmp.eq.s32.totalorder %s14, 1
    %p46 = por %p44, %p45
    %p47 = scmp.ne.s32.totalorder %s36, %s37
    %p48 = scmp.eq.s32.totalorder %s14, 0
    %p49 = por %p47, %p48
    %p50 = scmp.ne.s32.totalorder %s36, %s37
    %p51 = scmp.eq.s32.totalorder %s15, 1
    %p52 = por %p50, %p51
    %p54 = scmp.ne.s32.totalorder %s37, %s53
    %p55 = scmp.eq.s32.totalorder %s15, 0
    %p56 = por %p54, %p55
    %s58 = sadd.s32 %s57, 1
    %p61 = scmp.eq.s32.totalorder %s9, 1
    %p62 = scmp.ne.s32.totalorder %s57, %s59
    %p63 = scmp.eq.s32.totalorder %s9, 0
    %p64 = por %p62, %p63
    %p65 = scmp.ne.s32.totalorder %s57, %s59
    %p66 = scmp.eq.s32.totalorder %s14, 1
    %p67 = por %p65, %p66
    %p68 = scmp.ne.s32.totalorder %s59, %s60
    %p69 = scmp.eq.s32.totalorder %s14, 0
    %p70 = por %p68, %p69
    %p71 = scmp.ne.s32.totalorder %s59, %s60
    %p72 = scmp.eq.s32.totalorder %s15, 1
    %p73 = por %p71, %p72
    %p75 = scmp.ne.s32.totalorder %s60, %s74
    %p76 = scmp.eq.s32.totalorder %s15, 0
    %p77 = por %p75, %p76
    %s79 = sadd.s32 %s78, 1
    %p82 = scmp.eq.s32.totalorder %s9, 1
    %p83 = scmp.ne.s32.totalorder %s78, %s80
    %p84 = scmp.eq.s32.totalorder %s9, 0
    %p85 = por %p83, %p84
    %p86 = scmp.ne.s32.totalorder %s78, %s80
    %p87 = scmp.eq.s32.totalorder %s14, 1
    %p88 = por %p86, %p87
    %p89 = scmp.ne.s32.totalorder %s80, %s81
    %p90 = scmp.eq.s32.totalorder %s14, 0
    %p91 = por %p89, %p90
    %p92 = scmp.ne.s32.totalorder %s80, %s81
    %p93 = scmp.eq.s32.totalorder %s15, 1
    %p94 = por %p92, %p93
    %p96 = scmp.ne.s32.totalorder %s81, %s95
    %p97 = scmp.eq.s32.totalorder %s15, 0
    %p98 = por %p96, %p97
    %s99 = ssub.s32 %s16, %s28
    %s100 = ssub.s32 %s17, %s24
    %s101 = sor.u32 %s99, %s100
    %p102 = scmp.eq.s32.totalorder %s101, 0
    %s104 = sadd.s32 %s103, 1
    %s105 = scalar_select %p102, %s103, %s104
    %p108 = pneg %p102
    %p109 = scmp.eq.s32.totalorder %s9, 1
    %p110 = por %p108, %p109
    %p111 = scmp.ne.s32.totalorder %s103, %s106
    %p112 = scmp.eq.s32.totalorder %s9, 0
    %p113 = por %p111, %p112
    %p114 = scmp.ne.s32.totalorder %s103, %s106
    %p115 = scmp.eq.s32.totalorder %s14, 1
    %p116 = por %p114, %p115
    %p117 = scmp.ne.s32.totalorder %s106, %s107
    %p118 = scmp.eq.s32.totalorder %s14, 0
    %p119 = por %p117, %p118
    %p120 = scmp.ne.s32.totalorder %s106, %s107
    %p121 = scmp.eq.s32.totalorder %s15, 1
    %p122 = por %p120, %p121
    %p124 = scmp.ne.s32.totalorder %s107, %s123
    %p125 = scmp.eq.s32.totalorder %s15, 0
    %p126 = por %p124, %p125
    %p127 = scmp.le.s32.totalorder 1, %s9
    %p128 = scmp.lt.s32.totalorder %s9, 3
    %p129 = pnand %p127, %p128
    %p130 = pneg %p129
    // Predicated region
    $region9: #{_lambda_.6} parent=5 // pred_check
      _
    $region10: #{_lambda_.6} parent=5 // pred_check_branch
      %132 = sbr.rel (%p129) target = $region12
    $region11: #{_lambda_.6} parent=5 // pred_region
      %s133 = ssub.s32 %s9, 1
      // Predicated region
      $region13: #{_lambda_.6} parent=11 // pred_check
        %p134 = pneg %p70
      $region14: #{_lambda_.6} parent=11 // pred_check_branch
        %136 = sbr.rel (%p134) target = $region16
      $region15: #{_lambda_.6} parent=11 // pred_region
        _
      $region16: #{_lambda_.6} parent=11 // pred_fallthru
        _
      // Predicated region
      $region17: #{_lambda_.6} parent=11 // pred_check
        %p137 = pneg %p91
      $region18: #{_lambda_.6} parent=11 // pred_check_branch
        %139 = sbr.rel (%p137) target = $region20
      $region19: #{_lambda_.6} parent=11 // pred_region
        _
      $region20: #{_lambda_.6} parent=11 // pred_fallthru
        _
    $region12: #{_lambda_.6} parent=5 // pred_fallthru
      _
    %p140 = scmp.lt.s32.totalorder %s9, 2
    // Predicated region
    $region21: #{_lambda_.6} parent=5 // pred_check
      %p141 = pneg %p140
    $region22: #{_lambda_.6} parent=5 // pred_check_branch
      %143 = sbr.rel (%p141) target = $region24
    $region23: #{_lambda_.6} parent=5 // pred_region
      // Predicated region
      $region25: #{_lambda_.6} parent=23 // pred_check
        %p144 = pneg %p43
      $region26: #{_lambda_.6} parent=23 // pred_check_branch
        %146 = sbr.rel (%p144) target = $region28
      $region27: #{_lambda_.6} parent=23 // pred_region
        %p147 = scmp.lt.s32.totalorder %s16, 1
        %s148 = scalar_select %p147, %s16, 1
        %p149 = scmp.lt.s32.totalorder %s17, 0
        %s150 = scalar_select %p149, %s17, 0
        %s151 = smul.addr %s150, 9
        %s152 = smul.addr %s148, 9
        %s153 = sadd.s32 %s151, %s152
        %s154 = smul.addr %s153, 4
        %s155 = scalar_lea.vmem %s0, %s154
      $region28: #{_lambda_.6} parent=23 // pred_fallthru
        _
    $region24: #{_lambda_.6} parent=5 // pred_fallthru
      _
    %p156 = scmp.le.s32.totalorder 1, %s9
    %p157 = scmp.lt.s32.totalorder %s9, 3
    %p158 = pnand %p156, %p157
    %p159 = pneg %p158
    // Predicated region
    $region29: #{_lambda_.6} parent=5 // pred_check
      _
    $region30: #{_lambda_.6} parent=5 // pred_check_branch
      %161 = sbr.rel (%p158) target = $region32
    $region31: #{_lambda_.6} parent=5 // pred_region
      %s162 = ssub.s32 %s9, 1
      %p163 = scmp.lt.s32.totalorder %s18, 1
      %s164 = scalar_select %p163, %s18, 1
      %p165 = scmp.lt.s32.totalorder %s19, 0
      %s166 = scalar_select %p165, %s19, 0
      %s167 = smul.addr %s166, 9
      %s168 = smul.addr %s164, 9
      %s169 = sadd.s32 %s167, %s168
      %s170 = smul.addr %s169, 4
      %s171 = scalar_lea.vmem %s0, %s170
      %p172 = pneg %p49
      %p173 = pneg %p46
      %p174 = pneg %p70
      %p175 = pneg %p67
      %p176 = pneg %p91
      %p177 = pneg %p88
      %p178 = pneg %p119
      %p179 = pneg %p116
      %s180 = smul.u32 8, %s19
      %p181 = scmp.lt.s32.totalorder %s18, 1
      %s182 = scalar_select %p181, %s18, 1
      %p183 = scmp.lt.s32.totalorder %s180, 7
      %s184 = scalar_select %p183, %s180, 7
      %s185 = smul.addr %s182, 8
      %s186 = sadd.s32 %s184, %s185
      %s187 = smul.addr %s186, 4
      %s188 = scalar_lea.vmem %s3, %s187
      %p189 = scmp.lt.s32.totalorder %s18, 1
      %s190 = scalar_select %p189, %s18, 1
      %p191 = scmp.lt.s32.totalorder %s19, 0
      %s192 = scalar_select %p191, %s19, 0
      %s193 = smul.addr %s192, 9
      %s194 = smul.addr %s190, 9
      %s195 = sadd.s32 %s193, %s194
      %s196 = smul.addr %s195, 4
      %s197 = scalar_lea.vmem %s0, %s196
      %s198 = smul.u32 8, %s19
      %p199 = scmp.lt.s32.totalorder %s18, 1
      %s200 = scalar_select %p199, %s18, 1
      %p201 = scmp.lt.s32.totalorder %s198, 7
      %s202 = scalar_select %p201, %s198, 7
      %s203 = smul.addr %s200, 8
      %s204 = sadd.s32 %s202, %s203
      %s205 = smul.addr %s204, 4
      %s206 = scalar_lea.vmem %s3, %s205
      %s207 = smul.u32 8, %s19
      %v209 = vld [vmem:[%s197] sm:$0xf]
      %v210 = vld [vmem:[%s197 + $0x4] sm:$0xf]
      %v211 = vld [vmem:[%s197 + $0x8] sm:$0xf]
      %v212 = vld [vmem:[%s197 + $0xc] sm:$0xf]
      %v213 = vld [vmem:[%s197 + $0x10] sm:$0xf]
      %v214 = vld [vmem:[%s197 + $0x14] sm:$0xf]
      %v215 = vld [vmem:[%s197 + $0x18] sm:$0xf]
      %v216 = vld [vmem:[%s197 + $0x1c] sm:$0xf]
      %v217 = vld [vmem:[%s1] sm:$0xf]
      %v218 = vld [vmem:[%s1 + $0x4] sm:$0xf]
      %v227 = vunpack.c.l.b16 %v209
      %v228 = vunpack.c.l.b16 %v210
      %v229 = vunpack.c.l.b16 %v211
      %v230 = vunpack.c.l.b16 %v212
      %v231 = vunpack.c.l.b16 %v213
      %v232 = vunpack.c.l.b16 %v214
      %v233 = vunpack.c.l.b16 %v215
      %v234 = vunpack.c.l.b16 %v216
      %v235 = vpack.c.b16 %v228, %v227
      %v236 = vpack.c.b16 %v230, %v229
      %v237 = vpack.c.b16 %v232, %v231
      %v238 = vpack.c.b16 %v234, %v233
      %v241 = vunpack.c.l.b16 %v217
      %v242 = vunpack.c.l.b16 %v218
      %v243 = vpack.c.b16 %v242, %v241
      %vm245 = vcmask 130048
      %v247 = vsel %vm245, %v235, 0
      %v250 = vsel %vm245, %v236, 0
      %v253 = vsel %vm245, %v237, 0
      %v256 = vsel %vm245, %v238, 0
      %258 = vmatprep.subr.bf16.mxu0 0
      %259 = vmatpush1.bf16.msra.mxu0 %v243
      %260 = vmatprep.subr.bf16.mxu0 0
      %261 = vmatpush1.bf16.msra.mxu0 0
      %262 = vmatprep.subr.bf16.mxu0 0
      %263 = vmatpush1.bf16.msra.mxu0 0
      %264 = vmatprep.subr.bf16.mxu0 0
      %265 = vmatpush1.bf16.msra.mxu0 0
      %266 = vmatprep.subr.bf16.mxu0 0
      %267 = vmatpush1.bf16.msra.mxu0 0
      %268 = vmatprep.subr.bf16.mxu0 0
      %269 = vmatpush1.bf16.msra.mxu0 0
      %270 = vmatprep.subr.bf16.mxu0 0
      %271 = vmatpush1.bf16.msra.mxu0 0
      %272 = vmatprep.subr.bf16.mxu0 0
      %273 = vmatpush1.bf16.msra.mxu0 0
      %274 = vmatprep.subr.bf16.mxu0 0
      %275 = vmatpush1.bf16.msra.mxu0 0
      %276 = vmatprep.subr.bf16.mxu0 0
      %277 = vmatpush1.bf16.msra.mxu0 0
      %278 = vmatprep.subr.bf16.mxu0 0
      %279 = vmatpush1.bf16.msra.mxu0 0
      %280 = vmatprep.subr.bf16.mxu0 0
      %281 = vmatpush1.bf16.msra.mxu0 0
      %282 = vmatprep.subr.bf16.mxu0 0
      %283 = vmatpush1.bf16.msra.mxu0 0
      %284 = vmatprep.subr.bf16.mxu0 0
      %285 = vmatpush1.bf16.msra.mxu0 0
      %286 = vmatprep.subr.bf16.mxu0 0
      %287 = vmatpush1.bf16.msra.mxu0 0
      %288 = vmatprep.subr.bf16.mxu0 0
      %289 = vmatpush1.bf16.msra.mxu0 0
      %290 = vmatprep.mubr.bf16.mxu0 0
      %291 = vmatmul.mubr.bf16.gmra.mrb[0].mxu0 %v247
      %v292 = vpop.f32.mrb[0].mxu0
      %v293 = vadd.f32 0.0, %v292
      %v294 = vpop.f32.mrb[0].mxu0
      %v295 = vpop.f32.mrb[0].mxu0
      %v296 = vadd.f32 0.0, %v295
      %v297 = vpop.f32.mrb[0].mxu0
      %298 = vmatprep.mubr.bf16.mxu0 0
      %299 = vmatmul.mubr.bf16.gmra.mrb[0].mxu0 %v250
      %v300 = vpop.f32.mrb[0].mxu0
      %v301 = vadd.f32 0.0, %v300
      %v302 = vpop.f32.mrb[0].mxu0
      %v303 = vpop.f32.mrb[0].mxu0
      %v304 = vadd.f32 0.0, %v303
      %v305 = vpop.f32.mrb[0].mxu0
      %306 = vmatprep.mubr.bf16.mxu0 0
      %307 = vmatmul.mubr.bf16.gmra.mrb[0].mxu0 %v253
      %v308 = vpop.f32.mrb[0].mxu0
      %v309 = vadd.f32 0.0, %v308
      %v310 = vpop.f32.mrb[0].mxu0
      %v311 = vpop.f32.mrb[0].mxu0
      %v312 = vadd.f32 0.0, %v311
      %v313 = vpop.f32.mrb[0].mxu0
      %314 = vmatprep.mubr.bf16.mxu0 0
      %315 = vmatmul.mubr.bf16.gmra.mrb[0].mxu0 %v256
      %v316 = vpop.f32.mrb[0].mxu0
      %v317 = vadd.f32 0.0, %v316
      %v318 = vpop.f32.mrb[0].mxu0
      %v319 = vpop.f32.mrb[0].mxu0
      %v320 = vadd.f32 0.0, %v319
      %v321 = vpop.f32.mrb[0].mxu0
      %322 = vdwg.mxu0
      %323 = vst [vmem:[#allocation2] sm:$0xff] %v293
      %324 = vst [vmem:[#allocation2 + $0x8] sm:$0xff] %v296
      %325 = vst [vmem:[#allocation2 + $0x10] sm:$0xff] %v301
      %326 = vst [vmem:[#allocation2 + $0x18] sm:$0xff] %v304
      %327 = vst [vmem:[#allocation2 + $0x20] sm:$0xff] %v309
      %328 = vst [vmem:[#allocation2 + $0x28] sm:$0xff] %v312
      %329 = vst [vmem:[#allocation2 + $0x30] sm:$0xff] %v317
      %330 = vst [vmem:[#allocation2 + $0x38] sm:$0xff] %v320
      %v331 = vld [vmem:[%s197 + $0x4] sm:$0xf]
      %v332 = vld [vmem:[%s197 + $0x8] sm:$0xf]
      %v333 = vld [vmem:[%s197 + $0xc] sm:$0xf]
      %v334 = vld [vmem:[%s197 + $0x10] sm:$0xf]
      %v335 = vld [vmem:[%s197 + $0x14] sm:$0xf]
      %v336 = vld [vmem:[%s197 + $0x18] sm:$0xf]
      %v337 = vld [vmem:[%s197 + $0x1c] sm:$0xf]
      %v338 = vld [vmem:[%s197 + $0x20] sm:$0xf]
      %s339 = scalar_lea.vmem %s1, 8
      %v340 = vld [vmem:[%s339] sm:$0xf]
      %v341 = vld [vmem:[%s339 + $0x4] sm:$0xf]
      %v350 = vunpack.c.l.b16 %v331
      %v351 = vunpack.c.l.b16 %v332
      %v352 = vunpack.c.l.b16 %v333
      %v353 = vunpack.c.l.b16 %v334
      %v354 = vunpack.c.l.b16 %v335
      %v355 = vunpack.c.l.b16 %v336
      %v356 = vunpack.c.l.b16 %v337
      %v357 = vunpack.c.l.b16 %v338
      %v358 = vpack.c.b16 %v351, %v350
      %v359 = vpack.c.b16 %v353, %v352
      %v360 = vpack.c.b16 %v355, %v354
      %v361 = vpack.c.b16 %v357, %v356
      %v364 = vunpack.c.l.b16 %v340
      %v365 = vunpack.c.l.b16 %v341
      %v366 = vpack.c.b16 %v365, %v364
      %v369 = vsel %vm245, %v358, 0
      %v372 = vsel %vm245, %v359, 0
      %v375 = vsel %vm245, %v360, 0
      %v378 = vsel %vm245, %v361, 0
      %380 = vmatprep.subr.bf16.mxu0 0
      %381 = vmatpush1.bf16.msra.mxu0 %v366
      %382 = vmatprep.subr.bf16.mxu0 0
      %383 = vmatpush1.bf16.msra.mxu0 0
      %384 = vmatprep.subr.bf16.mxu0 0
      %385 = vmatpush1.bf16.msra.mxu0 0
      %386 = vmatprep.subr.bf16.mxu0 0
      %387 = vmatpush1.bf16.msra.mxu0 0
      %388 = vmatprep.subr.bf16.mxu0 0
      %389 = vmatpush1.bf16.msra.mxu0 0
      %390 = vmatprep.subr.bf16.mxu0 0
      %391 = vmatpush1.bf16.msra.mxu0 0
      %392 = vmatprep.subr.bf16.mxu0 0
      %393 = vmatpush1.bf16.msra.mxu0 0
      %394 = vmatprep.subr.bf16.mxu0 0
      %395 = vmatpush1.bf16.msra.mxu0 0
      %396 = vmatprep.subr.bf16.mxu0 0
      %397 = vmatpush1.bf16.msra.mxu0 0
      %398 = vmatprep.subr.bf16.mxu0 0
      %399 = vmatpush1.bf16.msra.mxu0 0
      %400 = vmatprep.subr.bf16.mxu0 0
      %401 = vmatpush1.bf16.msra.mxu0 0
      %402 = vmatprep.subr.bf16.mxu0 0
      %403 = vmatpush1.bf16.msra.mxu0 0
      %404 = vmatprep.subr.bf16.mxu0 0
      %405 = vmatpush1.bf16.msra.mxu0 0
      %406 = vmatprep.subr.bf16.mxu0 0
      %407 = vmatpush1.bf16.msra.mxu0 0
      %408 = vmatprep.subr.bf16.mxu0 0
      %409 = vmatpush1.bf16.msra.mxu0 0
      %410 = vmatprep.subr.bf16.mxu0 0
      %411 = vmatpush1.bf16.msra.mxu0 0
      %412 = vmatprep.mubr.bf16.mxu0 0
      %413 = vmatmul.mubr.bf16.gmra.mrb[0].mxu0 %v369
      %v414 = vpop.f32.mrb[0].mxu0
      %v415 = vadd.f32 0.0, %v414
      %v416 = vpop.f32.mrb[0].mxu0
      %v417 = vpop.f32.mrb[0].mxu0
      %v418 = vadd.f32 0.0, %v417
      %v419 = vpop.f32.mrb[0].mxu0
      %420 = vmatprep.mubr.bf16.mxu0 0
      %421 = vmatmul.mubr.bf16.gmra.mrb[0].mxu0 %v372
      %v422 = vpop.f32.mrb[0].mxu0
      %v423 = vadd.f32 0.0, %v422
      %v424 = vpop.f32.mrb[0].mxu0
      %v425 = vpop.f32.mrb[0].mxu0
      %v426 = vadd.f32 0.0, %v425
      %v427 = vpop.f32.mrb[0].mxu0
      %428 = vmatprep.mubr.bf16.mxu0 0
      %429 = vmatmul.mubr.bf16.gmra.mrb[0].mxu0 %v375
      %v430 = vpop.f32.mrb[0].mxu0
      %v431 = vadd.f32 0.0, %v430
      %v432 = vpop.f32.mrb[0].mxu0
      %v433 = vpop.f32.mrb[0].mxu0
      %v434 = vadd.f32 0.0, %v433
      %v435 = vpop.f32.mrb[0].mxu0
      %436 = vmatprep.mubr.bf16.mxu0 0
      %437 = vmatmul.mubr.bf16.gmra.mrb[0].mxu0 %v378
      %v438 = vpop.f32.mrb[0].mxu0
      %v439 = vadd.f32 0.0, %v438
      %v440 = vpop.f32.mrb[0].mxu0
      %v441 = vpop.f32.mrb[0].mxu0
      %v442 = vadd.f32 0.0, %v441
      %v443 = vpop.f32.mrb[0].mxu0
      %444 = vdwg.mxu0
      %v445 = vld [vmem:[#allocation2] sm:$0xff]
      %v446 = vld [vmem:[#allocation2 + $0x8] sm:$0xff]
      %v447 = vld [vmem:[#allocation2 + $0x10] sm:$0xff]
      %v448 = vld [vmem:[#allocation2 + $0x18] sm:$0xff]
      %v449 = vld [vmem:[#allocation2 + $0x20] sm:$0xff]
      %v450 = vld [vmem:[#allocation2 + $0x28] sm:$0xff]
      %v451 = vld [vmem:[#allocation2 + $0x30] sm:$0xff]
      %v452 = vld [vmem:[#allocation2 + $0x38] sm:$0xff]
      %v453 = vadd.f32 %v445, %v415
      %v454 = vadd.f32 %v446, %v418
      %v455 = vadd.f32 %v447, %v423
      %v456 = vadd.f32 %v448, %v426
      %v457 = vadd.f32 %v449, %v431
      %v458 = vadd.f32 %v450, %v434
      %v459 = vadd.f32 %v451, %v439
      %v460 = vadd.f32 %v452, %v442
      %461 = vst [vmem:[#allocation2] sm:$0xff] %v453
      %462 = vst [vmem:[#allocation2 + $0x8] sm:$0xff] %v454
      %463 = vst [vmem:[#allocation2 + $0x10] sm:$0xff] %v455
      %464 = vst [vmem:[#allocation2 + $0x18] sm:$0xff] %v456
      %465 = vst [vmem:[#allocation2 + $0x20] sm:$0xff] %v457
      %466 = vst [vmem:[#allocation2 + $0x28] sm:$0xff] %v458
      %467 = vst [vmem:[#allocation2 + $0x30] sm:$0xff] %v459
      %468 = vst [vmem:[#allocation2 + $0x38] sm:$0xff] %v460
      %v469 = vld [vmem:[#allocation2] sm:$0xff]
      %v470 = vld [vmem:[#allocation2 + $0x8] sm:$0xff]
      %v471 = vld [vmem:[#allocation2 + $0x10] sm:$0xff]
      %v472 = vld [vmem:[#allocation2 + $0x18] sm:$0xff]
      %v473 = vld [vmem:[#allocation2 + $0x20] sm:$0xff]
      %v474 = vld [vmem:[#allocation2 + $0x28] sm:$0xff]
      %v475 = vld [vmem:[#allocation2 + $0x30] sm:$0xff]
      %v476 = vld [vmem:[#allocation2 + $0x38] sm:$0xff]
      %v477 = vld [vmem:[%s2] sm:$0x1]
      %v479 = vlaneseq
      %v480 = vshrl.u32 %v479, 7
      %v481 = vsub.s32 0, %v480
      %v482 = vrot.slane %v477, %v481
      %v484 = vadd.f32 %v469, %v482
      %v485 = vadd.f32 %v470, %v482
      %v486 = vadd.f32 %v471, %v482
      %v487 = vadd.f32 %v472, %v482
      %v488 = vadd.f32 %v473, %v482
      %v489 = vadd.f32 %v474, %v482
      %v490 = vadd.f32 %v475, %v482
      %v491 = vadd.f32 %v476, %v482
      %v492 = vmax.f32 %v484, 0.0
      %v493 = vmax.f32 %v485, 0.0
      %v494 = vmax.f32 %v486, 0.0
      %v495 = vmax.f32 %v487, 0.0
      %v496 = vmax.f32 %v488, 0.0
      %v497 = vmax.f32 %v489, 0.0
      %v498 = vmax.f32 %v490, 0.0
      %v499 = vmax.f32 %v491, 0.0
      %v500 = vpack.c.bf16 %v493, %v492
      %v501 = vpack.c.bf16 %v495, %v494
      %v502 = vpack.c.bf16 %v497, %v496
      %v503 = vpack.c.bf16 %v499, %v498
      %v508 = vunpack.c.l.b16 %v500
      %v509 = vunpack.c.h.b16 %v500
      %v510 = vunpack.c.l.b16 %v501
      %v511 = vunpack.c.h.b16 %v501
      %v512 = vunpack.c.l.b16 %v502
      %v513 = vunpack.c.h.b16 %v502
      %v514 = vunpack.c.l.b16 %v503
      %v515 = vunpack.c.h.b16 %v503
      %v516 = vpack.c.b16 %v508, %v508
      %v517 = vpack.c.b16 %v509, %v509
      %v518 = vpack.c.b16 %v510, %v510
      %v519 = vpack.c.b16 %v511, %v511
      %v520 = vpack.c.b16 %v512, %v512
      %v521 = vpack.c.b16 %v513, %v513
      %v522 = vpack.c.b16 %v514, %v514
      %v523 = vpack.c.b16 %v515, %v515
      %532 = vst [vmem:[%s206] sm:$0xf] %v516
      %533 = vst [vmem:[%s206 + $0x4] sm:$0xf] %v517
      %534 = vst [vmem:[%s206 + $0x8] sm:$0xf] %v518
      %535 = vst [vmem:[%s206 + $0xc] sm:$0xf] %v519
      %536 = vst [vmem:[%s206 + $0x10] sm:$0xf] %v520
      %537 = vst [vmem:[%s206 + $0x14] sm:$0xf] %v521
      %538 = vst [vmem:[%s206 + $0x18] sm:$0xf] %v522
      %539 = vst [vmem:[%s206 + $0x1c] sm:$0xf] %v523
      %s540 = smul.u32 8, %s19
      %p541 = scmp.lt.s32.totalorder %s18, 1
      %s542 = scalar_select %p541, %s18, 1
      %p543 = scmp.lt.s32.totalorder %s540, 7
      %s544 = scalar_select %p543, %s540, 7
      %s545 = smul.addr %s542, 8
      %s546 = sadd.s32 %s544, %s545
      %s547 = smul.addr %s546, 4
      %s548 = scalar_lea.vmem %s3, %s547
      // Predicated region
      $region33: #{_lambda_.6} parent=31 // pred_check
        %p549 = pneg %p116
      $region34: #{_lambda_.6} parent=31 // pred_check_branch
        %551 = sbr.rel (%p549) target = $region36
      $region35: #{_lambda_.6} parent=31 // pred_region
        %s552 = smul.u32 8, %s19
      $region36: #{_lambda_.6} parent=31 // pred_fallthru
        _
    $region32: #{_lambda_.6} parent=5 // pred_fallthru
      _
    %p553 = scmp.le.s32.totalorder 2, %s9
    // Predicated region
    $region37: #{_lambda_.6} parent=5 // pred_check
      %p554 = pneg %p553
    $region38: #{_lambda_.6} parent=5 // pred_check_branch
      %556 = sbr.rel (%p554) target = $region40
    $region39: #{_lambda_.6} parent=5 // pred_region
      %s557 = ssub.s32 %s9, 2
      // Predicated region
      $region41: #{_lambda_.6} parent=39 // pred_check
        %p558 = pneg %p122
      $region42: #{_lambda_.6} parent=39 // pred_check_branch
        %560 = sbr.rel (%p558) target = $region44
      $region43: #{_lambda_.6} parent=39 // pred_region
        %s561 = smul.u32 8, %s21
        %p562 = scmp.lt.s32.totalorder %s20, 1
        %s563 = scalar_select %p562, %s20, 1
        %p564 = scmp.lt.s32.totalorder %s561, 7
        %s565 = scalar_select %p564, %s561, 7
        %s566 = smul.addr %s563, 8
        %s567 = sadd.s32 %s565, %s566
        %s568 = smul.addr %s567, 4
        %s569 = scalar_lea.vmem %s3, %s568
      $region44: #{_lambda_.6} parent=39 // pred_fallthru
        _
    $region40: #{_lambda_.6} parent=5 // pred_fallthru
      _
  $region6: #{_lambda_.6} parent=0 // loop_footer
    %s13 = sadd.s32 1, %s9
  $region7: #{_lambda_.6} parent=0 // loop_footer_branch
    %8 = sbr.rel target = $region3
  $region8: #{_lambda_.6} parent=0 // loop_exit
    _

// kernel: _lambda_.9
$region0: #{_lambda_.9}
  #allocation0 [shape = 'u32[]', space=smem, size = 0x4, offset = 0x4, fixed_abs, tag = 'smem constant byte address 0x4 - core index']
  #allocation1 [shape = 'u32[144,128]{1,0:T(1,128)}', space=vmem, size = 0x12000, scoped, tag = 'internal scratch']
  %s0 = inlined_call_operand.vmem [shape: bf16[2,1,32,16], index: 0, kind: input, shape index: {}]
  %s1 = inlined_call_operand.vmem [shape: bf16[1,16,128], index: 1, kind: input, shape index: {}]
  %s2 = inlined_call_operand.vmem [shape: f32[1,128], index: 2, kind: input, shape index: {}]
  %s3 = inlined_call_operand.vmem [shape: bf16[2,32,128], index: 3, kind: output, shape index: {}]
  %s4 = sld [smem:[#allocation0]]
  $region45: #{_lambda_.9} parent=0
    _
  %s6 = ssub.s32 1, %s4
  %s7 = scalar_select 0, %s6, %s4
  loop: start=0, step=1, limit=4
  $region2: #{_lambda_.9} parent=0 // loop_pre_header
    _
  $region3: #{_lambda_.9} parent=0 // loop_header
    %s9 = sphi 0, %s13
    %p10 = scmp.ge.s32.totalorder %s9, 4
    %s16 = sphi 0, %s28
    %s17 = sphi 0, %s24
    %s18 = sphi 0, %s16
    %s19 = sphi 0, %s17
    %s20 = sphi 0, %s18
    %s21 = sphi 0, %s19
    %s33 = sphi 0, %s35
    %s36 = sphi 0, %s33
    %s37 = sphi 0, %s36
    %s53 = sphi 0, %s37
    %s57 = sphi 0, %s57
    %s59 = sphi 0, %s57
    %s60 = sphi 0, %s59
    %s74 = sphi 0, %s60
    %s78 = sphi 0, %s78
    %s80 = sphi 0, %s78
    %s81 = sphi 0, %s80
    %s95 = sphi 0, %s81
    %s103 = sphi 0, %s105
    %s106 = sphi 0, %s103
    %s107 = sphi 0, %s106
    %s123 = sphi 0, %s107
  $region4: #{_lambda_.9} parent=0 // loop_header_branch
    %12 = sbr.rel (%p10) target = $region8
  $region5: #{_lambda_.9} parent=0 // loop_body
    %s14 = ssub.s32 %s9, 1
    %s15 = ssub.s32 %s9, 2
    %s22 = sadd.s32 1, %s17
    %p23 = scmp.ge.s32.totalorder %s22, 1
    %s24 = scalar_select %p23, 0, %s22
    %s25 = sadd.s32 1, %s16
    %s26 = scalar_select %p23, %s25, %s16
    %p27 = scmp.ge.s32.totalorder %s26, 2
    %s28 = scalar_select %p27, 0, %s26
    %s29 = ssub.s32 %s16, %s28
    %s30 = ssub.s32 %s17, %s24
    %s31 = sor.u32 %s29, %s30
    %p32 = scmp.eq.s32.totalorder %s31, 0
    %s34 = sadd.s32 %s33, 1
    %s35 = scalar_select %p32, %s33, %s34
    %p38 = pneg %p32
    %p39 = scmp.eq.s32.totalorder %s9, 1
    %p40 = por %p38, %p39
    %p41 = scmp.ne.s32.totalorder %s33, %s36
    %p42 = scmp.eq.s32.totalorder %s9, 0
    %p43 = por %p41, %p42
    %p44 = scmp.ne.s32.totalorder %s33, %s36
    %p45 = scmp.eq.s32.totalorder %s14, 1
    %p46 = por %p44, %p45
    %p47 = scmp.ne.s32.totalorder %s36, %s37
    %p48 = scmp.eq.s32.totalorder %s14, 0
    %p49 = por %p47, %p48
    %p50 = scmp.ne.s32.totalorder %s36, %s37
    %p51 = scmp.eq.s32.totalorder %s15, 1
    %p52 = por %p50, %p51
    %p54 = scmp.ne.s32.totalorder %s37, %s53
    %p55 = scmp.eq.s32.totalorder %s15, 0
    %p56 = por %p54, %p55
    %s58 = sadd.s32 %s57, 1
    %p61 = scmp.eq.s32.totalorder %s9, 1
    %p62 = scmp.ne.s32.totalorder %s57, %s59
    %p63 = scmp.eq.s32.totalorder %s9, 0
    %p64 = por %p62, %p63
    %p65 = scmp.ne.s32.totalorder %s57, %s59
    %p66 = scmp.eq.s32.totalorder %s14, 1
    %p67 = por %p65, %p66
    %p68 = scmp.ne.s32.totalorder %s59, %s60
    %p69 = scmp.eq.s32.totalorder %s14, 0
    %p70 = por %p68, %p69
    %p71 = scmp.ne.s32.totalorder %s59, %s60
    %p72 = scmp.eq.s32.totalorder %s15, 1
    %p73 = por %p71, %p72
    %p75 = scmp.ne.s32.totalorder %s60, %s74
    %p76 = scmp.eq.s32.totalorder %s15, 0
    %p77 = por %p75, %p76
    %s79 = sadd.s32 %s78, 1
    %p82 = scmp.eq.s32.totalorder %s9, 1
    %p83 = scmp.ne.s32.totalorder %s78, %s80
    %p84 = scmp.eq.s32.totalorder %s9, 0
    %p85 = por %p83, %p84
    %p86 = scmp.ne.s32.totalorder %s78, %s80
    %p87 = scmp.eq.s32.totalorder %s14, 1
    %p88 = por %p86, %p87
    %p89 = scmp.ne.s32.totalorder %s80, %s81
    %p90 = scmp.eq.s32.totalorder %s14, 0
    %p91 = por %p89, %p90
    %p92 = scmp.ne.s32.totalorder %s80, %s81
    %p93 = scmp.eq.s32.totalorder %s15, 1
    %p94 = por %p92, %p93
    %p96 = scmp.ne.s32.totalorder %s81, %s95
    %p97 = scmp.eq.s32.totalorder %s15, 0
    %p98 = por %p96, %p97
    %s99 = ssub.s32 %s16, %s28
    %s100 = ssub.s32 %s17, %s24
    %s101 = sor.u32 %s99, %s100
    %p102 = scmp.eq.s32.totalorder %s101, 0
    %s104 = sadd.s32 %s103, 1
    %s105 = scalar_select %p102, %s103, %s104
    %p108 = pneg %p102
    %p109 = scmp.eq.s32.totalorder %s9, 1
    %p110 = por %p108, %p109
    %p111 = scmp.ne.s32.totalorder %s103, %s106
    %p112 = scmp.eq.s32.totalorder %s9, 0
    %p113 = por %p111, %p112
    %p114 = scmp.ne.s32.totalorder %s103, %s106
    %p115 = scmp.eq.s32.totalorder %s14, 1
    %p116 = por %p114, %p115
    %p117 = scmp.ne.s32.totalorder %s106, %s107
    %p118 = scmp.eq.s32.totalorder %s14, 0
    %p119 = por %p117, %p118
    %p120 = scmp.ne.s32.totalorder %s106, %s107
    %p121 = scmp.eq.s32.totalorder %s15, 1
    %p122 = por %p120, %p121
    %p124 = scmp.ne.s32.totalorder %s107, %s123
    %p125 = scmp.eq.s32.totalorder %s15, 0
    %p126 = por %p124, %p125
    %p127 = scmp.le.s32.totalorder 1, %s9
    %p128 = scmp.lt.s32.totalorder %s9, 3
    %p129 = pnand %p127, %p128
    %p130 = pneg %p129
    // Predicated region
    $region9: #{_lambda_.9} parent=5 // pred_check
      _
    $region10: #{_lambda_.9} parent=5 // pred_check_branch
      %132 = sbr.rel (%p129) target = $region12
    $region11: #{_lambda_.9} parent=5 // pred_region
      %s133 = ssub.s32 %s9, 1
      // Predicated region
      $region13: #{_lambda_.9} parent=11 // pred_check
        %p134 = pneg %p70
      $region14: #{_lambda_.9} parent=11 // pred_check_branch
        %136 = sbr.rel (%p134) target = $region16
      $region15: #{_lambda_.9} parent=11 // pred_region
        _
      $region16: #{_lambda_.9} parent=11 // pred_fallthru
        _
      // Predicated region
      $region17: #{_lambda_.9} parent=11 // pred_check
        %p137 = pneg %p91
      $region18: #{_lambda_.9} parent=11 // pred_check_branch
        %139 = sbr.rel (%p137) target = $region20
      $region19: #{_lambda_.9} parent=11 // pred_region
        _
      $region20: #{_lambda_.9} parent=11 // pred_fallthru
        _
    $region12: #{_lambda_.9} parent=5 // pred_fallthru
      _
    %p140 = scmp.lt.s32.totalorder %s9, 2
    // Predicated region
    $region21: #{_lambda_.9} parent=5 // pred_check
      %p141 = pneg %p140
    $region22: #{_lambda_.9} parent=5 // pred_check_branch
      %143 = sbr.rel (%p141) target = $region24
    $region23: #{_lambda_.9} parent=5 // pred_region
      // Predicated region
      $region25: #{_lambda_.9} parent=23 // pred_check
        %p144 = pneg %p43
      $region26: #{_lambda_.9} parent=23 // pred_check_branch
        %146 = sbr.rel (%p144) target = $region28
      $region27: #{_lambda_.9} parent=23 // pred_region
        %p147 = scmp.lt.s32.totalorder %s16, 1
        %s148 = scalar_select %p147, %s16, 1
        %p149 = scmp.lt.s32.totalorder %s17, 0
        %s150 = scalar_select %p149, %s17, 0
        %s151 = smul.addr %s150, 4
        %s152 = smul.addr %s148, 4
        %s153 = sadd.s32 %s151, %s152
        %s154 = smul.addr %s153, 4
        %s155 = scalar_lea.vmem %s0, %s154
      $region28: #{_lambda_.9} parent=23 // pred_fallthru
        _
    $region24: #{_lambda_.9} parent=5 // pred_fallthru
      _
    %p156 = scmp.le.s32.totalorder 1, %s9
    %p157 = scmp.lt.s32.totalorder %s9, 3
    %p158 = pnand %p156, %p157
    %p159 = pneg %p158
    // Predicated region
    $region29: #{_lambda_.9} parent=5 // pred_check
      _
    $region30: #{_lambda_.9} parent=5 // pred_check_branch
      %161 = sbr.rel (%p158) target = $region32
    $region31: #{_lambda_.9} parent=5 // pred_region
      %s162 = ssub.s32 %s9, 1
      %p163 = scmp.lt.s32.totalorder %s18, 1
      %s164 = scalar_select %p163, %s18, 1
      %p165 = scmp.lt.s32.totalorder %s19, 0
      %s166 = scalar_select %p165, %s19, 0
      %s167 = smul.addr %s166, 4
      %s168 = smul.addr %s164, 4
      %s169 = sadd.s32 %s167, %s168
      %s170 = smul.addr %s169, 4
      %s171 = scalar_lea.vmem %s0, %s170
      %p172 = pneg %p49
      %p173 = pneg %p46
      %p174 = pneg %p70
      %p175 = pneg %p67
      %p176 = pneg %p91
      %p177 = pneg %p88
      %p178 = pneg %p119
      %p179 = pneg %p116
      %s180 = smul.u32 4, %s19
      %p181 = scmp.lt.s32.totalorder %s18, 1
      %s182 = scalar_select %p181, %s18, 1
      %p183 = scmp.lt.s32.totalorder %s180, 3
      %s184 = scalar_select %p183, %s180, 3
      %s185 = smul.addr %s182, 4
      %s186 = sadd.s32 %s184, %s185
      %s187 = smul.addr %s186, 4
      %s188 = scalar_lea.vmem %s3, %s187
      %p189 = scmp.lt.s32.totalorder %s18, 1
      %s190 = scalar_select %p189, %s18, 1
      %p191 = scmp.lt.s32.totalorder %s19, 0
      %s192 = scalar_select %p191, %s19, 0
      %s193 = smul.addr %s192, 4
      %s194 = smul.addr %s190, 4
      %s195 = sadd.s32 %s193, %s194
      %s196 = smul.addr %s195, 4
      %s197 = scalar_lea.vmem %s0, %s196
      %s198 = smul.u32 4, %s19
      %p199 = scmp.lt.s32.totalorder %s18, 1
      %s200 = scalar_select %p199, %s18, 1
      %p201 = scmp.lt.s32.totalorder %s198, 3
      %s202 = scalar_select %p201, %s198, 3
      %s203 = smul.addr %s200, 4
      %s204 = sadd.s32 %s202, %s203
      %s205 = smul.addr %s204, 4
      %s206 = scalar_lea.vmem %s3, %s205
      %s207 = smul.u32 4, %s19
      %v209 = vld [vmem:[%s197] sm:$0xf]
      %v210 = vld [vmem:[%s197 + $0x4] sm:$0xf]
      %v211 = vld [vmem:[%s197 + $0x8] sm:$0xf]
      %v212 = vld [vmem:[%s197 + $0xc] sm:$0xf]
      %v213 = vld [vmem:[%s1] sm:$0xf]
      %v214 = vld [vmem:[%s1 + $0x4] sm:$0xf]
      %v215 = vld [vmem:[%s2] sm:$0x1]
      %v217 = vlaneseq
      %v218 = vshrl.u32 %v217, 7
      %v219 = vsub.s32 0, %v218
      %v220 = vrot.slane %v215, %v219
      %v226 = vunpack.c.l.b16 %v209
      %v227 = vunpack.c.l.b16 %v210
      %v228 = vunpack.c.l.b16 %v211
      %v229 = vunpack.c.l.b16 %v212
      %v230 = vpack.c.b16 %v227, %v226
      %v231 = vpack.c.b16 %v229, %v228
      %v234 = vunpack.c.l.b16 %v213
      %v235 = vunpack.c.l.b16 %v214
      %v236 = vpack.c.b16 %v235, %v234
      %vm238 = vcmask 130048
      %v240 = vsel %vm238, %v230, 0
      %v243 = vsel %vm238, %v231, 0
      %245 = vmatprep.subr.bf16.mxu0 0
      %246 = vmatpush1.bf16.msra.mxu0 %v236
      %247 = vmatprep.subr.bf16.mxu0 0
      %248 = vmatpush1.bf16.msra.mxu0 0
      %249 = vmatprep.subr.bf16.mxu0 0
      %250 = vmatpush1.bf16.msra.mxu0 0
      %251 = vmatprep.subr.bf16.mxu0 0
      %252 = vmatpush1.bf16.msra.mxu0 0
      %253 = vmatprep.subr.bf16.mxu0 0
      %254 = vmatpush1.bf16.msra.mxu0 0
      %255 = vmatprep.subr.bf16.mxu0 0
      %256 = vmatpush1.bf16.msra.mxu0 0
      %257 = vmatprep.subr.bf16.mxu0 0
      %258 = vmatpush1.bf16.msra.mxu0 0
      %259 = vmatprep.subr.bf16.mxu0 0
      %260 = vmatpush1.bf16.msra.mxu0 0
      %261 = vmatprep.subr.bf16.mxu0 0
      %262 = vmatpush1.bf16.msra.mxu0 0
      %263 = vmatprep.subr.bf16.mxu0 0
      %264 = vmatpush1.bf16.msra.mxu0 0
      %265 = vmatprep.subr.bf16.mxu0 0
      %266 = vmatpush1.bf16.msra.mxu0 0
      %267 = vmatprep.subr.bf16.mxu0 0
      %268 = vmatpush1.bf16.msra.mxu0 0
      %269 = vmatprep.subr.bf16.mxu0 0
      %270 = vmatpush1.bf16.msra.mxu0 0
      %271 = vmatprep.subr.bf16.mxu0 0
      %272 = vmatpush1.bf16.msra.mxu0 0
      %273 = vmatprep.subr.bf16.mxu0 0
      %274 = vmatpush1.bf16.msra.mxu0 0
      %275 = vmatprep.subr.bf16.mxu0 0
      %276 = vmatpush1.bf16.msra.mxu0 0
      %277 = vmatprep.mubr.bf16.mxu0 0
      %278 = vmatmul.mubr.bf16.gmra.mrb[0].mxu0 %v240
      %v279 = vpop.f32.mrb[0].mxu0
      %v280 = vadd.f32 %v220, %v279
      %v281 = vpop.f32.mrb[0].mxu0
      %v282 = vpop.f32.mrb[0].mxu0
      %v283 = vadd.f32 %v220, %v282
      %v284 = vpop.f32.mrb[0].mxu0
      %285 = vmatprep.mubr.bf16.mxu0 0
      %286 = vmatmul.mubr.bf16.gmra.mrb[0].mxu0 %v243
      %v287 = vpop.f32.mrb[0].mxu0
      %v288 = vadd.f32 %v220, %v287
      %v289 = vpop.f32.mrb[0].mxu0
      %v290 = vpop.f32.mrb[0].mxu0
      %v291 = vadd.f32 %v220, %v290
      %v292 = vpop.f32.mrb[0].mxu0
      %293 = vdwg.mxu0
      %v294 = vmax.f32 %v280, 0.0
      %v295 = vmax.f32 %v283, 0.0
      %v296 = vmax.f32 %v288, 0.0
      %v297 = vmax.f32 %v291, 0.0
      %v298 = vpack.c.bf16 %v295, %v294
      %v299 = vpack.c.bf16 %v297, %v296
      %v302 = vunpack.c.l.b16 %v298
      %v303 = vunpack.c.h.b16 %v298
      %v304 = vunpack.c.l.b16 %v299
      %v305 = vunpack.c.h.b16 %v299
      %v306 = vpack.c.b16 %v302, %v302
      %v307 = vpack.c.b16 %v303, %v303
      %v308 = vpack.c.b16 %v304, %v304
      %v309 = vpack.c.b16 %v305, %v305
      %314 = vst [vmem:[%s206] sm:$0xf] %v306
      %315 = vst [vmem:[%s206 + $0x4] sm:$0xf] %v307
      %316 = vst [vmem:[%s206 + $0x8] sm:$0xf] %v308
      %317 = vst [vmem:[%s206 + $0xc] sm:$0xf] %v309
      %s318 = smul.u32 4, %s19
      %p319 = scmp.lt.s32.totalorder %s18, 1
      %s320 = scalar_select %p319, %s18, 1
      %p321 = scmp.lt.s32.totalorder %s318, 3
      %s322 = scalar_select %p321, %s318, 3
      %s323 = smul.addr %s320, 4
      %s324 = sadd.s32 %s322, %s323
      %s325 = smul.addr %s324, 4
      %s326 = scalar_lea.vmem %s3, %s325
      // Predicated region
      $region33: #{_lambda_.9} parent=31 // pred_check
        %p327 = pneg %p116
      $region34: #{_lambda_.9} parent=31 // pred_check_branch
        %329 = sbr.rel (%p327) target = $region36
      $region35: #{_lambda_.9} parent=31 // pred_region
        %s330 = smul.u32 4, %s19
      $region36: #{_lambda_.9} parent=31 // pred_fallthru
        _
    $region32: #{_lambda_.9} parent=5 // pred_fallthru
      _
    %p331 = scmp.le.s32.totalorder 2, %s9
    // Predicated region
    $region37: #{_lambda_.9} parent=5 // pred_check
      %p332 = pneg %p331
    $region38: #{_lambda_.9} parent=5 // pred_check_branch
      %334 = sbr.rel (%p332) target = $region40
    $region39: #{_lambda_.9} parent=5 // pred_region
      %s335 = ssub.s32 %s9, 2
      // Predicated region
      $region41: #{_lambda_.9} parent=39 // pred_check
        %p336 = pneg %p122
      $region42: #{_lambda_.9} parent=39 // pred_check_branch
        %338 = sbr.rel (%p336) target = $region44
      $region43: #{_lambda_.9} parent=39 // pred_region
        %s339 = smul.u32 4, %s21
        %p340 = scmp.lt.s32.totalorder %s20, 1
        %s341 = scalar_select %p340, %s20, 1
        %p342 = scmp.lt.s32.totalorder %s339, 3
        %s343 = scalar_select %p342, %s339, 3
        %s344 = smul.addr %s341, 4
        %s345 = sadd.s32 %s343, %s344
        %s346 = smul.addr %s345, 4
        %s347 = scalar_lea.vmem %s3, %s346
      $region44: #{_lambda_.9} parent=39 // pred_fallthru
        _
    $region40: #{_lambda_.9} parent=5 // pred_fallthru
      _
  $region6: #{_lambda_.9} parent=0 // loop_footer
    %s13 = sadd.s32 1, %s9
  $region7: #{_lambda_.9} parent=0 // loop_footer_branch
    %8 = sbr.rel target = $region3
  $region8: #{_lambda_.9} parent=0 // loop_exit
    _

// kernel: _lambda_.8
$region0: #{_lambda_.8}
  #allocation0 [shape = 'u32[]', space=smem, size = 0x4, offset = 0x4, fixed_abs, tag = 'smem constant byte address 0x4 - core index']
  #allocation1 [shape = 'u32[144,128]{1,0:T(1,128)}', space=vmem, size = 0x12000, scoped, tag = 'internal scratch']
  #allocation2 [shape = 'f32[32,128]{1,0:T(8,128)}', space=vmem, size = 0x4000, scoped, tag = 'scratch operand']
  %s0 = inlined_call_operand.vmem [shape: bf16[2,1,80,32], index: 0, kind: input, shape index: {}]
  %s1 = inlined_call_operand.vmem [shape: bf16[2,1,80,32], index: 1, kind: input, shape index: {}]
  %s2 = inlined_call_operand.vmem [shape: bf16[3,32,128], index: 2, kind: input, shape index: {}]
  %s3 = inlined_call_operand.vmem [shape: bf16[3,32,128], index: 3, kind: input, shape index: {}]
  %s4 = inlined_call_operand.vmem [shape: f32[1,128], index: 4, kind: input, shape index: {}]
  %s5 = inlined_call_operand.vmem [shape: bf16[2,32,128], index: 5, kind: output, shape index: {}]
  %s6 = sld [smem:[#allocation0]]
  $region53: #{_lambda_.8} parent=0
    _
  %s8 = ssub.s32 1, %s6
  %s9 = scalar_select 0, %s8, %s6
  loop: start=0, step=1, limit=4
  $region2: #{_lambda_.8} parent=0 // loop_pre_header
    _
  $region3: #{_lambda_.8} parent=0 // loop_header
    %s11 = sphi 0, %s15
    %p12 = scmp.ge.s32.totalorder %s11, 4
    %s18 = sphi 0, %s30
    %s19 = sphi 0, %s26
    %s20 = sphi 0, %s18
    %s21 = sphi 0, %s19
    %s22 = sphi 0, %s20
    %s23 = sphi 0, %s21
    %s35 = sphi 0, %s37
    %s38 = sphi 0, %s35
    %s39 = sphi 0, %s38
    %s55 = sphi 0, %s39
    %s63 = sphi 0, %s65
    %s66 = sphi 0, %s63
    %s67 = sphi 0, %s66
    %s83 = sphi 0, %s67
    %s87 = sphi 0, %s87
    %s89 = sphi 0, %s87
    %s90 = sphi 0, %s89
    %s104 = sphi 0, %s90
    %s108 = sphi 0, %s108
    %s110 = sphi 0, %s108
    %s111 = sphi 0, %s110
    %s125 = sphi 0, %s111
    %s129 = sphi 0, %s129
    %s131 = sphi 0, %s129
    %s132 = sphi 0, %s131
    %s146 = sphi 0, %s132
    %s154 = sphi 0, %s156
    %s157 = sphi 0, %s154
    %s158 = sphi 0, %s157
    %s174 = sphi 0, %s158
  $region4: #{_lambda_.8} parent=0 // loop_header_branch
    %14 = sbr.rel (%p12) target = $region8
  $region5: #{_lambda_.8} parent=0 // loop_body
    %s16 = ssub.s32 %s11, 1
    %s17 = ssub.s32 %s11, 2
    %s24 = sadd.s32 1, %s19
    %p25 = scmp.ge.s32.totalorder %s24, 1
    %s26 = scalar_select %p25, 0, %s24
    %s27 = sadd.s32 1, %s18
    %s28 = scalar_select %p25, %s27, %s18
    %p29 = scmp.ge.s32.totalorder %s28, 2
    %s30 = scalar_select %p29, 0, %s28
    %s31 = ssub.s32 %s18, %s30
    %s32 = ssub.s32 %s19, %s26
    %s33 = sor.u32 %s31, %s32
    %p34 = scmp.eq.s32.totalorder %s33, 0
    %s36 = sadd.s32 %s35, 1
    %s37 = scalar_select %p34, %s35, %s36
    %p40 = pneg %p34
    %p41 = scmp.eq.s32.totalorder %s11, 1
    %p42 = por %p40, %p41
    %p43 = scmp.ne.s32.totalorder %s35, %s38
    %p44 = scmp.eq.s32.totalorder %s11, 0
    %p45 = por %p43, %p44
    %p46 = scmp.ne.s32.totalorder %s35, %s38
    %p47 = scmp.eq.s32.totalorder %s16, 1
    %p48 = por %p46, %p47
    %p49 = scmp.ne.s32.totalorder %s38, %s39
    %p50 = scmp.eq.s32.totalorder %s16, 0
    %p51 = por %p49, %p50
    %p52 = scmp.ne.s32.totalorder %s38, %s39
    %p53 = scmp.eq.s32.totalorder %s17, 1
    %p54 = por %p52, %p53
    %p56 = scmp.ne.s32.totalorder %s39, %s55
    %p57 = scmp.eq.s32.totalorder %s17, 0
    %p58 = por %p56, %p57
    %s59 = ssub.s32 %s18, %s30
    %s60 = ssub.s32 %s19, %s26
    %s61 = sor.u32 %s59, %s60
    %p62 = scmp.eq.s32.totalorder %s61, 0
    %s64 = sadd.s32 %s63, 1
    %s65 = scalar_select %p62, %s63, %s64
    %p68 = pneg %p62
    %p69 = scmp.eq.s32.totalorder %s11, 1
    %p70 = por %p68, %p69
    %p71 = scmp.ne.s32.totalorder %s63, %s66
    %p72 = scmp.eq.s32.totalorder %s11, 0
    %p73 = por %p71, %p72
    %p74 = scmp.ne.s32.totalorder %s63, %s66
    %p75 = scmp.eq.s32.totalorder %s16, 1
    %p76 = por %p74, %p75
    %p77 = scmp.ne.s32.totalorder %s66, %s67
    %p78 = scmp.eq.s32.totalorder %s16, 0
    %p79 = por %p77, %p78
    %p80 = scmp.ne.s32.totalorder %s66, %s67
    %p81 = scmp.eq.s32.totalorder %s17, 1
    %p82 = por %p80, %p81
    %p84 = scmp.ne.s32.totalorder %s67, %s83
    %p85 = scmp.eq.s32.totalorder %s17, 0
    %p86 = por %p84, %p85
    %s88 = sadd.s32 %s87, 1
    %p91 = scmp.eq.s32.totalorder %s11, 1
    %p92 = scmp.ne.s32.totalorder %s87, %s89
    %p93 = scmp.eq.s32.totalorder %s11, 0
    %p94 = por %p92, %p93
    %p95 = scmp.ne.s32.totalorder %s87, %s89
    %p96 = scmp.eq.s32.totalorder %s16, 1
    %p97 = por %p95, %p96
    %p98 = scmp.ne.s32.totalorder %s89, %s90
    %p99 = scmp.eq.s32.totalorder %s16, 0
    %p100 = por %p98, %p99
    %p101 = scmp.ne.s32.totalorder %s89, %s90
    %p102 = scmp.eq.s32.totalorder %s17, 1
    %p103 = por %p101, %p102
    %p105 = scmp.ne.s32.totalorder %s90, %s104
    %p106 = scmp.eq.s32.totalorder %s17, 0
    %p107 = por %p105, %p106
    %s109 = sadd.s32 %s108, 1
    %p112 = scmp.eq.s32.totalorder %s11, 1
    %p113 = scmp.ne.s32.totalorder %s108, %s110
    %p114 = scmp.eq.s32.totalorder %s11, 0
    %p115 = por %p113, %p114
    %p116 = scmp.ne.s32.totalorder %s108, %s110
    %p117 = scmp.eq.s32.totalorder %s16, 1
    %p118 = por %p116, %p117
    %p119 = scmp.ne.s32.totalorder %s110, %s111
    %p120 = scmp.eq.s32.totalorder %s16, 0
    %p121 = por %p119, %p120
    %p122 = scmp.ne.s32.totalorder %s110, %s111
    %p123 = scmp.eq.s32.totalorder %s17, 1
    %p124 = por %p122, %p123
    %p126 = scmp.ne.s32.totalorder %s111, %s125
    %p127 = scmp.eq.s32.totalorder %s17, 0
    %p128 = por %p126, %p127
    %s130 = sadd.s32 %s129, 1
    %p133 = scmp.eq.s32.totalorder %s11, 1
    %p134 = scmp.ne.s32.totalorder %s129, %s131
    %p135 = scmp.eq.s32.totalorder %s11, 0
    %p136 = por %p134, %p135
    %p137 = scmp.ne.s32.totalorder %s129, %s131
    %p138 = scmp.eq.s32.totalorder %s16, 1
    %p139 = por %p137, %p138
    %p140 = scmp.ne.s32.totalorder %s131, %s132
    %p141 = scmp.eq.s32.totalorder %s16, 0
    %p142 = por %p140, %p141
    %p143 = scmp.ne.s32.totalorder %s131, %s132
    %p144 = scmp.eq.s32.totalorder %s17, 1
    %p145 = por %p143, %p144
    %p147 = scmp.ne.s32.totalorder %s132, %s146
    %p148 = scmp.eq.s32.totalorder %s17, 0
    %p149 = por %p147, %p148
    %s150 = ssub.s32 %s18, %s30
    %s151 = ssub.s32 %s19, %s26
    %s152 = sor.u32 %s150, %s151
    %p153 = scmp.eq.s32.totalorder %s152, 0
    %s155 = sadd.s32 %s154, 1
    %s156 = scalar_select %p153, %s154, %s155
    %p159 = pneg %p153
    %p160 = scmp.eq.s32.totalorder %s11, 1
    %p161 = por %p159, %p160
    %p162 = scmp.ne.s32.totalorder %s154, %s157
    %p163 = scmp.eq.s32.totalorder %s11, 0
    %p164 = por %p162, %p163
    %p165 = scmp.ne.s32.totalorder %s154, %s157
    %p166 = scmp.eq.s32.totalorder %s16, 1
    %p167 = por %p165, %p166
    %p168 = scmp.ne.s32.totalorder %s157, %s158
    %p169 = scmp.eq.s32.totalorder %s16, 0
    %p170 = por %p168, %p169
    %p171 = scmp.ne.s32.totalorder %s157, %s158
    %p172 = scmp.eq.s32.totalorder %s17, 1
    %p173 = por %p171, %p172
    %p175 = scmp.ne.s32.totalorder %s158, %s174
    %p176 = scmp.eq.s32.totalorder %s17, 0
    %p177 = por %p175, %p176
    %p178 = scmp.le.s32.totalorder 1, %s11
    %p179 = scmp.lt.s32.totalorder %s11, 3
    %p180 = pnand %p178, %p179
    %p181 = pneg %p180
    // Predicated region
    $region9: #{_lambda_.8} parent=5 // pred_check
      _
    $region10: #{_lambda_.8} parent=5 // pred_check_branch
      %183 = sbr.rel (%p180) target = $region12
    $region11: #{_lambda_.8} parent=5 // pred_region
      %s184 = ssub.s32 %s11, 1
      // Predicated region
      $region13: #{_lambda_.8} parent=11 // pred_check
        %p185 = pneg %p100
      $region14: #{_lambda_.8} parent=11 // pred_check_branch
        %187 = sbr.rel (%p185) target = $region16
      $region15: #{_lambda_.8} parent=11 // pred_region
        _
      $region16: #{_lambda_.8} parent=11 // pred_fallthru
        _
      // Predicated region
      $region17: #{_lambda_.8} parent=11 // pred_check
        %p188 = pneg %p121
      $region18: #{_lambda_.8} parent=11 // pred_check_branch
        %190 = sbr.rel (%p188) target = $region20
      $region19: #{_lambda_.8} parent=11 // pred_region
        _
      $region20: #{_lambda_.8} parent=11 // pred_fallthru
        _
      // Predicated region
      $region21: #{_lambda_.8} parent=11 // pred_check
        %p191 = pneg %p142
      $region22: #{_lambda_.8} parent=11 // pred_check_branch
        %193 = sbr.rel (%p191) target = $region24
      $region23: #{_lambda_.8} parent=11 // pred_region
        _
      $region24: #{_lambda_.8} parent=11 // pred_fallthru
        _
    $region12: #{_lambda_.8} parent=5 // pred_fallthru
      _
    %p194 = scmp.lt.s32.totalorder %s11, 2
    // Predicated region
    $region25: #{_lambda_.8} parent=5 // pred_check
      %p195 = pneg %p194
    $region26: #{_lambda_.8} parent=5 // pred_check_branch
      %197 = sbr.rel (%p195) target = $region28
    $region27: #{_lambda_.8} parent=5 // pred_region
      // Predicated region
      $region29: #{_lambda_.8} parent=27 // pred_check
        %p198 = pneg %p45
      $region30: #{_lambda_.8} parent=27 // pred_check_branch
        %200 = sbr.rel (%p198) target = $region32
      $region31: #{_lambda_.8} parent=27 // pred_region
        %p201 = scmp.lt.s32.totalorder %s18, 1
        %s202 = scalar_select %p201, %s18, 1
        %p203 = scmp.lt.s32.totalorder %s19, 0
        %s204 = scalar_select %p203, %s19, 0
        %s205 = smul.addr %s204, 10
        %s206 = smul.addr %s202, 10
        %s207 = sadd.s32 %s205, %s206
        %s208 = smul.addr %s207, 4
        %s209 = scalar_lea.vmem %s0, %s208
      $region32: #{_lambda_.8} parent=27 // pred_fallthru
        _
      // Predicated region
      $region33: #{_lambda_.8} parent=27 // pred_check
        %p210 = pneg %p73
      $region34: #{_lambda_.8} parent=27 // pred_check_branch
        %212 = sbr.rel (%p210) target = $region36
      $region35: #{_lambda_.8} parent=27 // pred_region
        %p213 = scmp.lt.s32.totalorder %s18, 1
        %s214 = scalar_select %p213, %s18, 1
        %p215 = scmp.lt.s32.totalorder %s19, 0
        %s216 = scalar_select %p215, %s19, 0
        %s217 = smul.addr %s216, 10
        %s218 = smul.addr %s214, 10
        %s219 = sadd.s32 %s217, %s218
        %s220 = smul.addr %s219, 4
        %s221 = scalar_lea.vmem %s1, %s220
      $region36: #{_lambda_.8} parent=27 // pred_fallthru
        _
    $region28: #{_lambda_.8} parent=5 // pred_fallthru
      _
    %p222 = scmp.le.s32.totalorder 1, %s11
    %p223 = scmp.lt.s32.totalorder %s11, 3
    %p224 = pnand %p222, %p223
    %p225 = pneg %p224
    // Predicated region
    $region37: #{_lambda_.8} parent=5 // pred_check
      _
    $region38: #{_lambda_.8} parent=5 // pred_check_branch
      %227 = sbr.rel (%p224) target = $region40
    $region39: #{_lambda_.8} parent=5 // pred_region
      %s228 = ssub.s32 %s11, 1
      %p229 = scmp.lt.s32.totalorder %s20, 1
      %s230 = scalar_select %p229, %s20, 1
      %p231 = scmp.lt.s32.totalorder %s21, 0
      %s232 = scalar_select %p231, %s21, 0
      %s233 = smul.addr %s232, 10
      %s234 = smul.addr %s230, 10
      %s235 = sadd.s32 %s233, %s234
      %s236 = smul.addr %s235, 4
      %s237 = scalar_lea.vmem %s0, %s236
      %p238 = pneg %p51
      %p239 = pneg %p48
      %p240 = scmp.lt.s32.totalorder %s20, 1
      %s241 = scalar_select %p240, %s20, 1
      %p242 = scmp.lt.s32.totalorder %s21, 0
      %s243 = scalar_select %p242, %s21, 0
      %s244 = smul.addr %s243, 10
      %s245 = smul.addr %s241, 10
      %s246 = sadd.s32 %s244, %s245
      %s247 = smul.addr %s246, 4
      %s248 = scalar_lea.vmem %s1, %s247
      %p249 = pneg %p79
      %p250 = pneg %p76
      %p251 = pneg %p100
      %p252 = pneg %p97
      %p253 = pneg %p121
      %p254 = pneg %p118
      %p255 = pneg %p142
      %p256 = pneg %p139
      %p257 = pneg %p170
      %p258 = pneg %p167
      %s259 = smul.u32 4, %s21
      %p260 = scmp.lt.s32.totalorder %s20, 1
      %s261 = scalar_select %p260, %s20, 1
      %p262 = scmp.lt.s32.totalorder %s259, 3
      %s263 = scalar_select %p262, %s259, 3
      %s264 = smul.addr %s261, 4
      %s265 = sadd.s32 %s263, %s264
      %s266 = smul.addr %s265, 4
      %s267 = scalar_lea.vmem %s5, %s266
      %p268 = scmp.lt.s32.totalorder %s20, 1
      %s269 = scalar_select %p268, %s20, 1
      %p270 = scmp.lt.s32.totalorder %s21, 0
      %s271 = scalar_select %p270, %s21, 0
      %s272 = smul.addr %s271, 10
      %s273 = smul.addr %s269, 10
      %s274 = sadd.s32 %s272, %s273
      %s275 = smul.addr %s274, 4
      %s276 = scalar_lea.vmem %s0, %s275
      %p277 = scmp.lt.s32.totalorder %s20, 1
      %s278 = scalar_select %p277, %s20, 1
      %p279 = scmp.lt.s32.totalorder %s21, 0
      %s280 = scalar_select %p279, %s21, 0
      %s281 = smul.addr %s280, 10
      %s282 = smul.addr %s278, 10
      %s283 = sadd.s32 %s281, %s282
      %s284 = smul.addr %s283, 4
      %s285 = scalar_lea.vmem %s1, %s284
      %s286 = smul.u32 4, %s21
      %p287 = scmp.lt.s32.totalorder %s20, 1
      %s288 = scalar_select %p287, %s20, 1
      %p289 = scmp.lt.s32.totalorder %s286, 3
      %s290 = scalar_select %p289, %s286, 3
      %s291 = smul.addr %s288, 4
      %s292 = sadd.s32 %s290, %s291
      %s293 = smul.addr %s292, 4
      %s294 = scalar_lea.vmem %s5, %s293
      %s295 = smul.u32 4, %s21
      %v297 = vld [vmem:[%s276] sm:$0xf]
      %v298 = vld [vmem:[%s276 + $0x4] sm:$0xf]
      %v299 = vld [vmem:[%s276 + $0x8] sm:$0xf]
      %v300 = vld [vmem:[%s276 + $0xc] sm:$0xf]
      %v301 = vld [vmem:[%s2] sm:$0xf]
      %v302 = vld [vmem:[%s2 + $0x4] sm:$0xf]
      %v303 = vld [vmem:[%s2 + $0x8] sm:$0xf]
      %v304 = vld [vmem:[%s2 + $0xc] sm:$0xf]
      %v309 = vunpack.c.l.b16 %v297
      %v310 = vunpack.c.l.b16 %v298
      %v311 = vunpack.c.l.b16 %v299
      %v312 = vunpack.c.l.b16 %v300
      %v313 = vpack.c.b16 %v310, %v309
      %v314 = vpack.c.b16 %v312, %v311
      %v319 = vunpack.c.l.b16 %v301
      %v320 = vunpack.c.l.b16 %v302
      %v321 = vunpack.c.l.b16 %v303
      %v322 = vunpack.c.l.b16 %v304
      %v323 = vpack.c.b16 %v320, %v319
      %v324 = vpack.c.b16 %v322, %v321
      %vm327 = vcmask 261120
      %v329 = vsel %vm327, %v313, 0
      %v332 = vsel %vm327, %v314, 0
      %334 = vmatprep.subr.bf16.mxu0 0
      %335 = vmatpush1.bf16.msra.mxu0 %v323
      %336 = vmatprep.subr.bf16.mxu0 0
      %337 = vmatpush1.bf16.msra.mxu0 %v324
      %338 = vmatprep.subr.bf16.mxu0 0
      %339 = vmatpush1.bf16.msra.mxu0 0
      %340 = vmatprep.subr.bf16.mxu0 0
      %341 = vmatpush1.bf16.msra.mxu0 0
      %342 = vmatprep.subr.bf16.mxu0 0
      %343 = vmatpush1.bf16.msra.mxu0 0
      %344 = vmatprep.subr.bf16.mxu0 0
      %345 = vmatpush1.bf16.msra.mxu0 0
      %346 = vmatprep.subr.bf16.mxu0 0
      %347 = vmatpush1.bf16.msra.mxu0 0
      %348 = vmatprep.subr.bf16.mxu0 0
      %349 = vmatpush1.bf16.msra.mxu0 0
      %350 = vmatprep.subr.bf16.mxu0 0
      %351 = vmatpush1.bf16.msra.mxu0 0
      %352 = vmatprep.subr.bf16.mxu0 0
      %353 = vmatpush1.bf16.msra.mxu0 0
      %354 = vmatprep.subr.bf16.mxu0 0
      %355 = vmatpush1.bf16.msra.mxu0 0
      %356 = vmatprep.subr.bf16.mxu0 0
      %357 = vmatpush1.bf16.msra.mxu0 0
      %358 = vmatprep.subr.bf16.mxu0 0
      %359 = vmatpush1.bf16.msra.mxu0 0
      %360 = vmatprep.subr.bf16.mxu0 0
      %361 = vmatpush1.bf16.msra.mxu0 0
      %362 = vmatprep.subr.bf16.mxu0 0
      %363 = vmatpush1.bf16.msra.mxu0 0
      %364 = vmatprep.subr.bf16.mxu0 0
      %365 = vmatpush1.bf16.msra.mxu0 0
      %366 = vmatprep.mubr.bf16.mxu0 0
      %367 = vmatmul.mubr.bf16.gmra.mrb[0].mxu0 %v329
      %v368 = vpop.f32.mrb[0].mxu0
      %v369 = vadd.f32 0.0, %v368
      %v370 = vpop.f32.mrb[0].mxu0
      %v371 = vpop.f32.mrb[0].mxu0
      %v372 = vadd.f32 0.0, %v371
      %v373 = vpop.f32.mrb[0].mxu0
      %374 = vmatprep.mubr.bf16.mxu0 0
      %375 = vmatmul.mubr.bf16.gmra.mrb[0].mxu0 %v332
      %v376 = vpop.f32.mrb[0].mxu0
      %v377 = vadd.f32 0.0, %v376
      %v378 = vpop.f32.mrb[0].mxu0
      %v379 = vpop.f32.mrb[0].mxu0
      %v380 = vadd.f32 0.0, %v379
      %v381 = vpop.f32.mrb[0].mxu0
      %382 = vdwg.mxu0
      %383 = vst [vmem:[#allocation2] sm:$0xff] %v369
      %384 = vst [vmem:[#allocation2 + $0x8] sm:$0xff] %v372
      %385 = vst [vmem:[#allocation2 + $0x10] sm:$0xff] %v377
      %386 = vst [vmem:[#allocation2 + $0x18] sm:$0xff] %v380
      %v387 = vld [vmem:[%s276 + $0x14] sm:$0xf]
      %v388 = vld [vmem:[%s276 + $0x18] sm:$0xf]
      %v389 = vld [vmem:[%s276 + $0x1c] sm:$0xf]
      %v390 = vld [vmem:[%s276 + $0x20] sm:$0xf]
      %s391 = scalar_lea.vmem %s2, 16
      %v392 = vld [vmem:[%s391] sm:$0xf]
      %v393 = vld [vmem:[%s391 + $0x4] sm:$0xf]
      %v394 = vld [vmem:[%s391 + $0x8] sm:$0xf]
      %v395 = vld [vmem:[%s391 + $0xc] sm:$0xf]
      %v400 = vunpack.c.l.b16 %v387
      %v401 = vunpack.c.l.b16 %v388
      %v402 = vunpack.c.l.b16 %v389
      %v403 = vunpack.c.l.b16 %v390
      %v404 = vpack.c.b16 %v401, %v400
      %v405 = vpack.c.b16 %v403, %v402
      %v410 = vunpack.c.l.b16 %v392
      %v411 = vunpack.c.l.b16 %v393
      %v412 = vunpack.c.l.b16 %v394
      %v413 = vunpack.c.l.b16 %v395
      %v414 = vpack.c.b16 %v411, %v410
      %v415 = vpack.c.b16 %v413, %v412
      %v419 = vsel %vm327, %v404, 0
      %v422 = vsel %vm327, %v405, 0
      %424 = vmatprep.subr.bf16.mxu0 0
      %425 = vmatpush1.bf16.msra.mxu0 %v414
      %426 = vmatprep.subr.bf16.mxu0 0
      %427 = vmatpush1.bf16.msra.mxu0 %v415
      %428 = vmatprep.subr.bf16.mxu0 0
      %429 = vmatpush1.bf16.msra.mxu0 0
      %430 = vmatprep.subr.bf16.mxu0 0
      %431 = vmatpush1.bf16.msra.mxu0 0
      %432 = vmatprep.subr.bf16.mxu0 0
      %433 = vmatpush1.bf16.msra.mxu0 0
      %434 = vmatprep.subr.bf16.mxu0 0
      %435 = vmatpush1.bf16.msra.mxu0 0
      %436 = vmatprep.subr.bf16.mxu0 0
      %437 = vmatpush1.bf16.msra.mxu0 0
      %438 = vmatprep.subr.bf16.mxu0 0
      %439 = vmatpush1.bf16.msra.mxu0 0
      %440 = vmatprep.subr.bf16.mxu0 0
      %441 = vmatpush1.bf16.msra.mxu0 0
      %442 = vmatprep.subr.bf16.mxu0 0
      %443 = vmatpush1.bf16.msra.mxu0 0
      %444 = vmatprep.subr.bf16.mxu0 0
      %445 = vmatpush1.bf16.msra.mxu0 0
      %446 = vmatprep.subr.bf16.mxu0 0
      %447 = vmatpush1.bf16.msra.mxu0 0
      %448 = vmatprep.subr.bf16.mxu0 0
      %449 = vmatpush1.bf16.msra.mxu0 0
      %450 = vmatprep.subr.bf16.mxu0 0
      %451 = vmatpush1.bf16.msra.mxu0 0
      %452 = vmatprep.subr.bf16.mxu0 0
      %453 = vmatpush1.bf16.msra.mxu0 0
      %454 = vmatprep.subr.bf16.mxu0 0
      %455 = vmatpush1.bf16.msra.mxu0 0
      %456 = vmatprep.mubr.bf16.mxu0 0
      %457 = vmatmul.mubr.bf16.gmra.mrb[0].mxu0 %v419
      %v458 = vpop.f32.mrb[0].mxu0
      %v459 = vadd.f32 0.0, %v458
      %v460 = vpop.f32.mrb[0].mxu0
      %v461 = vpop.f32.mrb[0].mxu0
      %v462 = vadd.f32 0.0, %v461
      %v463 = vpop.f32.mrb[0].mxu0
      %464 = vmatprep.mubr.bf16.mxu0 0
      %465 = vmatmul.mubr.bf16.gmra.mrb[0].mxu0 %v422
      %v466 = vpop.f32.mrb[0].mxu0
      %v467 = vadd.f32 0.0, %v466
      %v468 = vpop.f32.mrb[0].mxu0
      %v469 = vpop.f32.mrb[0].mxu0
      %v470 = vadd.f32 0.0, %v469
      %v471 = vpop.f32.mrb[0].mxu0
      %472 = vdwg.mxu0
      %v473 = vld [vmem:[#allocation2] sm:$0xff]
      %v474 = vld [vmem:[#allocation2 + $0x8] sm:$0xff]
      %v475 = vld [vmem:[#allocation2 + $0x10] sm:$0xff]
      %v476 = vld [vmem:[#allocation2 + $0x18] sm:$0xff]
      %v477 = vadd.f32 %v473, %v459
      %v478 = vadd.f32 %v474, %v462
      %v479 = vadd.f32 %v475, %v467
      %v480 = vadd.f32 %v476, %v470
      %481 = vst [vmem:[#allocation2] sm:$0xff] %v477
      %482 = vst [vmem:[#allocation2 + $0x8] sm:$0xff] %v478
      %483 = vst [vmem:[#allocation2 + $0x10] sm:$0xff] %v479
      %484 = vst [vmem:[#allocation2 + $0x18] sm:$0xff] %v480
      %v485 = vld [vmem:[%s276 + $0x4] sm:$0xf]
      %v486 = vld [vmem:[%s276 + $0x8] sm:$0xf]
      %v487 = vld [vmem:[%s276 + $0xc] sm:$0xf]
      %v488 = vld [vmem:[%s276 + $0x10] sm:$0xf]
      %s489 = scalar_lea.vmem %s2, 32
      %v490 = vld [vmem:[%s489] sm:$0xf]
      %v491 = vld [vmem:[%s489 + $0x4] sm:$0xf]
      %v492 = vld [vmem:[%s489 + $0x8] sm:$0xf]
      %v493 = vld [vmem:[%s489 + $0xc] sm:$0xf]
      %v498 = vunpack.c.l.b16 %v485
      %v499 = vunpack.c.l.b16 %v486
      %v500 = vunpack.c.l.b16 %v487
      %v501 = vunpack.c.l.b16 %v488
      %v502 = vpack.c.b16 %v499, %v498
      %v503 = vpack.c.b16 %v501, %v500
      %v508 = vunpack.c.l.b16 %v490
      %v509 = vunpack.c.l.b16 %v491
      %v510 = vunpack.c.l.b16 %v492
      %v511 = vunpack.c.l.b16 %v493
      %v512 = vpack.c.b16 %v509, %v508
      %v513 = vpack.c.b16 %v511, %v510
      %v517 = vsel %vm327, %v502, 0
      %v520 = vsel %vm327, %v503, 0
      %522 = vmatprep.subr.bf16.mxu0 0
      %523 = vmatpush1.bf16.msra.mxu0 %v512
      %524 = vmatprep.subr.bf16.mxu0 0
      %525 = vmatpush1.bf16.msra.mxu0 %v513
      %526 = vmatprep.subr.bf16.mxu0 0
      %527 = vmatpush1.bf16.msra.mxu0 0
      %528 = vmatprep.subr.bf16.mxu0 0
      %529 = vmatpush1.bf16.msra.mxu0 0
      %530 = vmatprep.subr.bf16.mxu0 0
      %531 = vmatpush1.bf16.msra.mxu0 0
      %532 = vmatprep.subr.bf16.mxu0 0
      %533 = vmatpush1.bf16.msra.mxu0 0
      %534 = vmatprep.subr.bf16.mxu0 0
      %535 = vmatpush1.bf16.msra.mxu0 0
      %536 = vmatprep.subr.bf16.mxu0 0
      %537 = vmatpush1.bf16.msra.mxu0 0
      %538 = vmatprep.subr.bf16.mxu0 0
      %539 = vmatpush1.bf16.msra.mxu0 0
      %540 = vmatprep.subr.bf16.mxu0 0
      %541 = vmatpush1.bf16.msra.mxu0 0
      %542 = vmatprep.subr.bf16.mxu0 0
      %543 = vmatpush1.bf16.msra.mxu0 0
      %544 = vmatprep.subr.bf16.mxu0 0
      %545 = vmatpush1.bf16.msra.mxu0 0
      %546 = vmatprep.subr.bf16.mxu0 0
      %547 = vmatpush1.bf16.msra.mxu0 0
      %548 = vmatprep.subr.bf16.mxu0 0
      %549 = vmatpush1.bf16.msra.mxu0 0
      %550 = vmatprep.subr.bf16.mxu0 0
      %551 = vmatpush1.bf16.msra.mxu0 0
      %552 = vmatprep.subr.bf16.mxu0 0
      %553 = vmatpush1.bf16.msra.mxu0 0
      %554 = vmatprep.mubr.bf16.mxu0 0
      %555 = vmatmul.mubr.bf16.gmra.mrb[0].mxu0 %v517
      %v556 = vpop.f32.mrb[0].mxu0
      %v557 = vadd.f32 0.0, %v556
      %v558 = vpop.f32.mrb[0].mxu0
      %v559 = vpop.f32.mrb[0].mxu0
      %v560 = vadd.f32 0.0, %v559
      %v561 = vpop.f32.mrb[0].mxu0
      %562 = vmatprep.mubr.bf16.mxu0 0
      %563 = vmatmul.mubr.bf16.gmra.mrb[0].mxu0 %v520
      %v564 = vpop.f32.mrb[0].mxu0
      %v565 = vadd.f32 0.0, %v564
      %v566 = vpop.f32.mrb[0].mxu0
      %v567 = vpop.f32.mrb[0].mxu0
      %v568 = vadd.f32 0.0, %v567
      %v569 = vpop.f32.mrb[0].mxu0
      %570 = vdwg.mxu0
      %v571 = vld [vmem:[#allocation2] sm:$0xff]
      %v572 = vld [vmem:[#allocation2 + $0x8] sm:$0xff]
      %v573 = vld [vmem:[#allocation2 + $0x10] sm:$0xff]
      %v574 = vld [vmem:[#allocation2 + $0x18] sm:$0xff]
      %v575 = vadd.f32 %v571, %v557
      %v576 = vadd.f32 %v572, %v560
      %v577 = vadd.f32 %v573, %v565
      %v578 = vadd.f32 %v574, %v568
      %579 = vst [vmem:[#allocation2] sm:$0xff] %v575
      %580 = vst [vmem:[#allocation2 + $0x8] sm:$0xff] %v576
      %581 = vst [vmem:[#allocation2 + $0x10] sm:$0xff] %v577
      %582 = vst [vmem:[#allocation2 + $0x18] sm:$0xff] %v578
      %v583 = vld [vmem:[%s285] sm:$0xf]
      %v584 = vld [vmem:[%s285 + $0x4] sm:$0xf]
      %v585 = vld [vmem:[%s285 + $0x8] sm:$0xf]
      %v586 = vld [vmem:[%s285 + $0xc] sm:$0xf]
      %v587 = vld [vmem:[%s3] sm:$0xf]
      %v588 = vld [vmem:[%s3 + $0x4] sm:$0xf]
      %v589 = vld [vmem:[%s3 + $0x8] sm:$0xf]
      %v590 = vld [vmem:[%s3 + $0xc] sm:$0xf]
      %v595 = vunpack.c.l.b16 %v583
      %v596 = vunpack.c.l.b16 %v584
      %v597 = vunpack.c.l.b16 %v585
      %v598 = vunpack.c.l.b16 %v586
      %v599 = vpack.c.b16 %v596, %v595
      %v600 = vpack.c.b16 %v598, %v597
      %v605 = vunpack.c.l.b16 %v587
      %v606 = vunpack.c.l.b16 %v588
      %v607 = vunpack.c.l.b16 %v589
      %v608 = vunpack.c.l.b16 %v590
      %v609 = vpack.c.b16 %v606, %v605
      %v610 = vpack.c.b16 %v608, %v607
      %v614 = vsel %vm327, %v599, 0
      %v617 = vsel %vm327, %v600, 0
      %619 = vmatprep.subr.bf16.mxu0 0
      %620 = vmatpush1.bf16.msra.mxu0 %v609
      %621 = vmatprep.subr.bf16.mxu0 0
      %622 = vmatpush1.bf16.msra.mxu0 %v610
      %623 = vmatprep.subr.bf16.mxu0 0
      %624 = vmatpush1.bf16.msra.mxu0 0
      %625 = vmatprep.subr.bf16.mxu0 0
      %626 = vmatpush1.bf16.msra.mxu0 0
      %627 = vmatprep.subr.bf16.mxu0 0
      %628 = vmatpush1.bf16.msra.mxu0 0
      %629 = vmatprep.subr.bf16.mxu0 0
      %630 = vmatpush1.bf16.msra.mxu0 0
      %631 = vmatprep.subr.bf16.mxu0 0
      %632 = vmatpush1.bf16.msra.mxu0 0
      %633 = vmatprep.subr.bf16.mxu0 0
      %634 = vmatpush1.bf16.msra.mxu0 0
      %635 = vmatprep.subr.bf16.mxu0 0
      %636 = vmatpush1.bf16.msra.mxu0 0
      %637 = vmatprep.subr.bf16.mxu0 0
      %638 = vmatpush1.bf16.msra.mxu0 0
      %639 = vmatprep.subr.bf16.mxu0 0
      %640 = vmatpush1.bf16.msra.mxu0 0
      %641 = vmatprep.subr.bf16.mxu0 0
      %642 = vmatpush1.bf16.msra.mxu0 0
      %643 = vmatprep.subr.bf16.mxu0 0
      %644 = vmatpush1.bf16.msra.mxu0 0
      %645 = vmatprep.subr.bf16.mxu0 0
      %646 = vmatpush1.bf16.msra.mxu0 0
      %647 = vmatprep.subr.bf16.mxu0 0
      %648 = vmatpush1.bf16.msra.mxu0 0
      %649 = vmatprep.subr.bf16.mxu0 0
      %650 = vmatpush1.bf16.msra.mxu0 0
      %651 = vmatprep.mubr.bf16.mxu0 0
      %652 = vmatmul.mubr.bf16.gmra.mrb[0].mxu0 %v614
      %v653 = vpop.f32.mrb[0].mxu0
      %v654 = vadd.f32 0.0, %v653
      %v655 = vpop.f32.mrb[0].mxu0
      %v656 = vpop.f32.mrb[0].mxu0
      %v657 = vadd.f32 0.0, %v656
      %v658 = vpop.f32.mrb[0].mxu0
      %659 = vmatprep.mubr.bf16.mxu0 0
      %660 = vmatmul.mubr.bf16.gmra.mrb[0].mxu0 %v617
      %v661 = vpop.f32.mrb[0].mxu0
      %v662 = vadd.f32 0.0, %v661
      %v663 = vpop.f32.mrb[0].mxu0
      %v664 = vpop.f32.mrb[0].mxu0
      %v665 = vadd.f32 0.0, %v664
      %v666 = vpop.f32.mrb[0].mxu0
      %667 = vdwg.mxu0
      %v668 = vld [vmem:[#allocation2] sm:$0xff]
      %v669 = vld [vmem:[#allocation2 + $0x8] sm:$0xff]
      %v670 = vld [vmem:[#allocation2 + $0x10] sm:$0xff]
      %v671 = vld [vmem:[#allocation2 + $0x18] sm:$0xff]
      %v672 = vadd.f32 %v668, %v654
      %v673 = vadd.f32 %v669, %v657
      %v674 = vadd.f32 %v670, %v662
      %v675 = vadd.f32 %v671, %v665
      %676 = vst [vmem:[#allocation2] sm:$0xff] %v672
      %677 = vst [vmem:[#allocation2 + $0x8] sm:$0xff] %v673
      %678 = vst [vmem:[#allocation2 + $0x10] sm:$0xff] %v674
      %679 = vst [vmem:[#allocation2 + $0x18] sm:$0xff] %v675
      %v680 = vld [vmem:[%s285 + $0x14] sm:$0xf]
      %v681 = vld [vmem:[%s285 + $0x18] sm:$0xf]
      %v682 = vld [vmem:[%s285 + $0x1c] sm:$0xf]
      %v683 = vld [vmem:[%s285 + $0x20] sm:$0xf]
      %s684 = scalar_lea.vmem %s3, 16
      %v685 = vld [vmem:[%s684] sm:$0xf]
      %v686 = vld [vmem:[%s684 + $0x4] sm:$0xf]
      %v687 = vld [vmem:[%s684 + $0x8] sm:$0xf]
      %v688 = vld [vmem:[%s684 + $0xc] sm:$0xf]
      %v693 = vunpack.c.l.b16 %v680
      %v694 = vunpack.c.l.b16 %v681
      %v695 = vunpack.c.l.b16 %v682
      %v696 = vunpack.c.l.b16 %v683
      %v697 = vpack.c.b16 %v694, %v693
      %v698 = vpack.c.b16 %v696, %v695
      %v703 = vunpack.c.l.b16 %v685
      %v704 = vunpack.c.l.b16 %v686
      %v705 = vunpack.c.l.b16 %v687
      %v706 = vunpack.c.l.b16 %v688
      %v707 = vpack.c.b16 %v704, %v703
      %v708 = vpack.c.b16 %v706, %v705
      %v712 = vsel %vm327, %v697, 0
      %v715 = vsel %vm327, %v698, 0
      %717 = vmatprep.subr.bf16.mxu0 0
      %718 = vmatpush1.bf16.msra.mxu0 %v707
      %719 = vmatprep.subr.bf16.mxu0 0
      %720 = vmatpush1.bf16.msra.mxu0 %v708
      %721 = vmatprep.subr.bf16.mxu0 0
      %722 = vmatpush1.bf16.msra.mxu0 0
      %723 = vmatprep.subr.bf16.mxu0 0
      %724 = vmatpush1.bf16.msra.mxu0 0
      %725 = vmatprep.subr.bf16.mxu0 0
      %726 = vmatpush1.bf16.msra.mxu0 0
      %727 = vmatprep.subr.bf16.mxu0 0
      %728 = vmatpush1.bf16.msra.mxu0 0
      %729 = vmatprep.subr.bf16.mxu0 0
      %730 = vmatpush1.bf16.msra.mxu0 0
      %731 = vmatprep.subr.bf16.mxu0 0
      %732 = vmatpush1.bf16.msra.mxu0 0
      %733 = vmatprep.subr.bf16.mxu0 0
      %734 = vmatpush1.bf16.msra.mxu0 0
      %735 = vmatprep.subr.bf16.mxu0 0
      %736 = vmatpush1.bf16.msra.mxu0 0
      %737 = vmatprep.subr.bf16.mxu0 0
      %738 = vmatpush1.bf16.msra.mxu0 0
      %739 = vmatprep.subr.bf16.mxu0 0
      %740 = vmatpush1.bf16.msra.mxu0 0
      %741 = vmatprep.subr.bf16.mxu0 0
      %742 = vmatpush1.bf16.msra.mxu0 0
      %743 = vmatprep.subr.bf16.mxu0 0
      %744 = vmatpush1.bf16.msra.mxu0 0
      %745 = vmatprep.subr.bf16.mxu0 0
      %746 = vmatpush1.bf16.msra.mxu0 0
      %747 = vmatprep.subr.bf16.mxu0 0
      %748 = vmatpush1.bf16.msra.mxu0 0
      %749 = vmatprep.mubr.bf16.mxu0 0
      %750 = vmatmul.mubr.bf16.gmra.mrb[0].mxu0 %v712
      %v751 = vpop.f32.mrb[0].mxu0
      %v752 = vadd.f32 0.0, %v751
      %v753 = vpop.f32.mrb[0].mxu0
      %v754 = vpop.f32.mrb[0].mxu0
      %v755 = vadd.f32 0.0, %v754
      %v756 = vpop.f32.mrb[0].mxu0
      %757 = vmatprep.mubr.bf16.mxu0 0
      %758 = vmatmul.mubr.bf16.gmra.mrb[0].mxu0 %v715
      %v759 = vpop.f32.mrb[0].mxu0
      %v760 = vadd.f32 0.0, %v759
      %v761 = vpop.f32.mrb[0].mxu0
      %v762 = vpop.f32.mrb[0].mxu0
      %v763 = vadd.f32 0.0, %v762
      %v764 = vpop.f32.mrb[0].mxu0
      %765 = vdwg.mxu0
      %v766 = vld [vmem:[#allocation2] sm:$0xff]
      %v767 = vld [vmem:[#allocation2 + $0x8] sm:$0xff]
      %v768 = vld [vmem:[#allocation2 + $0x10] sm:$0xff]
      %v769 = vld [vmem:[#allocation2 + $0x18] sm:$0xff]
      %v770 = vadd.f32 %v766, %v752
      %v771 = vadd.f32 %v767, %v755
      %v772 = vadd.f32 %v768, %v760
      %v773 = vadd.f32 %v769, %v763
      %774 = vst [vmem:[#allocation2] sm:$0xff] %v770
      %775 = vst [vmem:[#allocation2 + $0x8] sm:$0xff] %v771
      %776 = vst [vmem:[#allocation2 + $0x10] sm:$0xff] %v772
      %777 = vst [vmem:[#allocation2 + $0x18] sm:$0xff] %v773
      %v778 = vld [vmem:[%s285 + $0x4] sm:$0xf]
      %v779 = vld [vmem:[%s285 + $0x8] sm:$0xf]
      %v780 = vld [vmem:[%s285 + $0xc] sm:$0xf]
      %v781 = vld [vmem:[%s285 + $0x10] sm:$0xf]
      %s782 = scalar_lea.vmem %s3, 32
      %v783 = vld [vmem:[%s782] sm:$0xf]
      %v784 = vld [vmem:[%s782 + $0x4] sm:$0xf]
      %v785 = vld [vmem:[%s782 + $0x8] sm:$0xf]
      %v786 = vld [vmem:[%s782 + $0xc] sm:$0xf]
      %v791 = vunpack.c.l.b16 %v778
      %v792 = vunpack.c.l.b16 %v779
      %v793 = vunpack.c.l.b16 %v780
      %v794 = vunpack.c.l.b16 %v781
      %v795 = vpack.c.b16 %v792, %v791
      %v796 = vpack.c.b16 %v794, %v793
      %v801 = vunpack.c.l.b16 %v783
      %v802 = vunpack.c.l.b16 %v784
      %v803 = vunpack.c.l.b16 %v785
      %v804 = vunpack.c.l.b16 %v786
      %v805 = vpack.c.b16 %v802, %v801
      %v806 = vpack.c.b16 %v804, %v803
      %v810 = vsel %vm327, %v795, 0
      %v813 = vsel %vm327, %v796, 0
      %815 = vmatprep.subr.bf16.mxu0 0
      %816 = vmatpush1.bf16.msra.mxu0 %v805
      %817 = vmatprep.subr.bf16.mxu0 0
      %818 = vmatpush1.bf16.msra.mxu0 %v806
      %819 = vmatprep.subr.bf16.mxu0 0
      %820 = vmatpush1.bf16.msra.mxu0 0
      %821 = vmatprep.subr.bf16.mxu0 0
      %822 = vmatpush1.bf16.msra.mxu0 0
      %823 = vmatprep.subr.bf16.mxu0 0
      %824 = vmatpush1.bf16.msra.mxu0 0
      %825 = vmatprep.subr.bf16.mxu0 0
      %826 = vmatpush1.bf16.msra.mxu0 0
      %827 = vmatprep.subr.bf16.mxu0 0
      %828 = vmatpush1.bf16.msra.mxu0 0
      %829 = vmatprep.subr.bf16.mxu0 0
      %830 = vmatpush1.bf16.msra.mxu0 0
      %831 = vmatprep.subr.bf16.mxu0 0
      %832 = vmatpush1.bf16.msra.mxu0 0
      %833 = vmatprep.subr.bf16.mxu0 0
      %834 = vmatpush1.bf16.msra.mxu0 0
      %835 = vmatprep.subr.bf16.mxu0 0
      %836 = vmatpush1.bf16.msra.mxu0 0
      %837 = vmatprep.subr.bf16.mxu0 0
      %838 = vmatpush1.bf16.msra.mxu0 0
      %839 = vmatprep.subr.bf16.mxu0 0
      %840 = vmatpush1.bf16.msra.mxu0 0
      %841 = vmatprep.subr.bf16.mxu0 0
      %842 = vmatpush1.bf16.msra.mxu0 0
      %843 = vmatprep.subr.bf16.mxu0 0
      %844 = vmatpush1.bf16.msra.mxu0 0
      %845 = vmatprep.subr.bf16.mxu0 0
      %846 = vmatpush1.bf16.msra.mxu0 0
      %847 = vmatprep.mubr.bf16.mxu0 0
      %848 = vmatmul.mubr.bf16.gmra.mrb[0].mxu0 %v810
      %v849 = vpop.f32.mrb[0].mxu0
      %v850 = vadd.f32 0.0, %v849
      %v851 = vpop.f32.mrb[0].mxu0
      %v852 = vpop.f32.mrb[0].mxu0
      %v853 = vadd.f32 0.0, %v852
      %v854 = vpop.f32.mrb[0].mxu0
      %855 = vmatprep.mubr.bf16.mxu0 0
      %856 = vmatmul.mubr.bf16.gmra.mrb[0].mxu0 %v813
      %v857 = vpop.f32.mrb[0].mxu0
      %v858 = vadd.f32 0.0, %v857
      %v859 = vpop.f32.mrb[0].mxu0
      %v860 = vpop.f32.mrb[0].mxu0
      %v861 = vadd.f32 0.0, %v860
      %v862 = vpop.f32.mrb[0].mxu0
      %863 = vdwg.mxu0
      %v864 = vld [vmem:[#allocation2] sm:$0xff]
      %v865 = vld [vmem:[#allocation2 + $0x8] sm:$0xff]
      %v866 = vld [vmem:[#allocation2 + $0x10] sm:$0xff]
      %v867 = vld [vmem:[#allocation2 + $0x18] sm:$0xff]
      %v868 = vadd.f32 %v864, %v850
      %v869 = vadd.f32 %v865, %v853
      %v870 = vadd.f32 %v866, %v858
      %v871 = vadd.f32 %v867, %v861
      %872 = vst [vmem:[#allocation2] sm:$0xff] %v868
      %873 = vst [vmem:[#allocation2 + $0x8] sm:$0xff] %v869
      %874 = vst [vmem:[#allocation2 + $0x10] sm:$0xff] %v870
      %875 = vst [vmem:[#allocation2 + $0x18] sm:$0xff] %v871
      %v876 = vld [vmem:[#allocation2] sm:$0xff]
      %v877 = vld [vmem:[#allocation2 + $0x8] sm:$0xff]
      %v878 = vld [vmem:[#allocation2 + $0x10] sm:$0xff]
      %v879 = vld [vmem:[#allocation2 + $0x18] sm:$0xff]
      %v880 = vld [vmem:[%s4] sm:$0x1]
      %v882 = vlaneseq
      %v883 = vshrl.u32 %v882, 7
      %v884 = vsub.s32 0, %v883
      %v885 = vrot.slane %v880, %v884
      %v887 = vadd.f32 %v876, %v885
      %v888 = vadd.f32 %v877, %v885
      %v889 = vadd.f32 %v878, %v885
      %v890 = vadd.f32 %v879, %v885
      %v891 = vmax.f32 %v887, 0.0
      %v892 = vmax.f32 %v888, 0.0
      %v893 = vmax.f32 %v889, 0.0
      %v894 = vmax.f32 %v890, 0.0
      %v895 = vpack.c.bf16 %v892, %v891
      %v896 = vpack.c.bf16 %v894, %v893
      %v899 = vunpack.c.l.b16 %v895
      %v900 = vunpack.c.h.b16 %v895
      %v901 = vunpack.c.l.b16 %v896
      %v902 = vunpack.c.h.b16 %v896
      %v903 = vpack.c.b16 %v899, %v899
      %v904 = vpack.c.b16 %v900, %v900
      %v905 = vpack.c.b16 %v901, %v901
      %v906 = vpack.c.b16 %v902, %v902
      %911 = vst [vmem:[%s294] sm:$0xf] %v903
      %912 = vst [vmem:[%s294 + $0x4] sm:$0xf] %v904
      %913 = vst [vmem:[%s294 + $0x8] sm:$0xf] %v905
      %914 = vst [vmem:[%s294 + $0xc] sm:$0xf] %v906
      %s915 = smul.u32 4, %s21
      %p916 = scmp.lt.s32.totalorder %s20, 1
      %s917 = scalar_select %p916, %s20, 1
      %p918 = scmp.lt.s32.totalorder %s915, 3
      %s919 = scalar_select %p918, %s915, 3
      %s920 = smul.addr %s917, 4
      %s921 = sadd.s32 %s919, %s920
      %s922 = smul.addr %s921, 4
      %s923 = scalar_lea.vmem %s5, %s922
      // Predicated region
      $region41: #{_lambda_.8} parent=39 // pred_check
        %p924 = pneg %p167
      $region42: #{_lambda_.8} parent=39 // pred_check_branch
        %926 = sbr.rel (%p924) target = $region44
      $region43: #{_lambda_.8} parent=39 // pred_region
        %s927 = smul.u32 4, %s21
      $region44: #{_lambda_.8} parent=39 // pred_fallthru
        _
    $region40: #{_lambda_.8} parent=5 // pred_fallthru
      _
    %p928 = scmp.le.s32.totalorder 2, %s11
    // Predicated region
    $region45: #{_lambda_.8} parent=5 // pred_check
      %p929 = pneg %p928
    $region46: #{_lambda_.8} parent=5 // pred_check_branch
      %931 = sbr.rel (%p929) target = $region48
    $region47: #{_lambda_.8} parent=5 // pred_region
      %s932 = ssub.s32 %s11, 2
      // Predicated region
      $region49: #{_lambda_.8} parent=47 // pred_check
        %p933 = pneg %p173
      $region50: #{_lambda_.8} parent=47 // pred_check_branch
        %935 = sbr.rel (%p933) target = $region52
      $region51: #{_lambda_.8} parent=47 // pred_region
        %s936 = smul.u32 4, %s23
        %p937 = scmp.lt.s32.totalorder %s22, 1
        %s938 = scalar_select %p937, %s22, 1
        %p939 = scmp.lt.s32.totalorder %s936, 3
        %s940 = scalar_select %p939, %s936, 3
        %s941 = smul.addr %s938, 4
        %s942 = sadd.s32 %s940, %s941
        %s943 = smul.addr %s942, 4
        %s944 = scalar_lea.vmem %s5, %s943
      $region52: #{_lambda_.8} parent=47 // pred_fallthru
        _
    $region48: #{_lambda_.8} parent=5 // pred_fallthru
      _
  $region6: #{_lambda_.8} parent=0 // loop_footer
    %s15 = sadd.s32 1, %s11
  $region7: #{_lambda_.8} parent=0 // loop_footer_branch
    %10 = sbr.rel target = $region3
  $region8: #{_lambda_.8} parent=0 // loop_exit
    _

</llo_original>
